<compile_context>
chip_gen: v7x
topology: tpu7x:2x2x1
jax: 0.10.0
libtpu: 0.0.40
codegen_flags: <defaults>
</compile_context>

<pallas_src>
import functools

import numpy as np
import jax
import jax.numpy as jnp
from jax import lax
from jax.experimental import pallas as pl
from jax.experimental.pallas import tpu as pltpu

NC_PAD = 128  # FC output lanes (num_classes padded to one full lane group)


# ---------------------------------------------------------------------------
# Fused kernel: one grid step == one block of `nb` images
# ---------------------------------------------------------------------------
def _fused_convnet_kernel(x_ref, w1_ref, b1_ref, w2_ref, b2_ref,
                          sel1_ref, wn_ref, diag_ref, q_ref, bfc_ref, o_ref,
                          *, cin, c1, c2, H, W, nb):
    # Static geometry (all Python ints).
    Hp1, Wp1 = H + 2, W + 2                        # padded input, conv1
    L1 = (H - 1) * Wp1 + W                         # conv1 accumulator columns
    Ho, Wo = H // 2, W // 2                        # after pool1
    Wp2 = Wo + 2                                   # padded row width, conv2
    L2 = (Ho - 1) * Wp2 + Wo                       # conv2 accumulator columns
    Hq, Wq = Ho // 2, Wo // 2                      # after pool2
    Lm1 = 2 * (Ho - 1) * Wp1 + 2 * (Wo - 1) + 1    # pool1 base positions
    Lm2 = 2 * (Hq - 1) * Wp2 + 2 * (Wq - 1) + 1    # pool2 base positions

    rows = []
    for i in range(nb):                            # unrolled per-image loop
        x_img = x_ref[i]                           # (cin, Hp1*Wp1), bf16

        # ----- conv1 (3x3, pad 1) + bias + ReLU ------------------------------
        if cin == 1:
            # Hoisted cast + sublane broadcast (once per image, not per tap);
            # 9 taps are then plain VPU multiply-adds on pre-broadcast slabs.
            xb = jnp.broadcast_to(x_img.astype(jnp.float32), (c1, Hp1 * Wp1))
            acc1 = jnp.broadcast_to(b1_ref[...], (c1, L1))   # start from bias
            for k in range(9):
                dy, dx = divmod(k, 3)
                off = dy * Wp1 + dx
                acc1 = acc1 + w1_ref[:, k:k + 1] * xb[:, off:off + L1]
            a1 = jnp.maximum(acc1, 0.0)            # (c1, L1)
        else:
            # General cin: stack the 9 shifted views along sublanes and do a
            # single K = 9*cin MXU matmul (same structure as conv2 below).
            views = []
            for k in range(9):
                dy, dx = divmod(k, 3)
                off = dy * Wp1 + dx
                views.append(x_img[:, off:off + L1])
            stacked = jnp.concatenate(views, axis=0)          # (9*cin, L1)
            acc1 = jnp.dot(w1_ref[...], stacked,
                           preferred_element_type=jnp.float32)
            a1 = jnp.maximum(acc1 + b1_ref[...], 0.0)

        # ----- pool1: max of 4 shifted views, downsample + re-pad via Sel1 ---
        m1 = jnp.maximum(
            jnp.maximum(a1[:, 0:Lm1], a1[:, 1:1 + Lm1]),
            jnp.maximum(a1[:, Wp1:Wp1 + Lm1], a1[:, Wp1 + 1:Wp1 + 1 + Lm1]))
        p1 = jnp.dot(m1.astype(jnp.bfloat16), sel1_ref[...],
                     preferred_element_type=jnp.float32)      # (c1,(Ho+2)*(Wo+2))
        p1 = p1.astype(jnp.bfloat16)

        # ----- conv2 (3x3, pad 1) as ONE K = 9*c1 matmul ----------------------
        views2 = []
        for k in range(9):
            dy, dx = divmod(k, 3)
            off = dy * Wp2 + dx
            views2.append(p1[:, off:off + L2])                # (c1, L2) each
        stacked2 = jnp.concatenate(views2, axis=0)            # (9*c1, L2)
        acc2 = jnp.dot(w2_ref[...], stacked2,
                       preferred_element_type=jnp.float32)    # (c2, L2)
        a2 = jnp.maximum(acc2 + b2_ref[...], 0.0)

        # ----- pool2 + (select  ∘  flatten  ∘  FC) folded ---------------------
        m2 = jnp.maximum(
            jnp.maximum(a2[:, 0:Lm2], a2[:, 1:1 + Lm2]),
            jnp.maximum(a2[:, Wp2:Wp2 + Lm2], a2[:, Wp2 + 1:Wp2 + 1 + Lm2]))
        # g[c, n*c2 + c'] = sum_q m2[c, q] * wfc[n, c', yq, xq]  (q = pool base)
        g = jnp.dot(m2.astype(jnp.bfloat16), wn_ref[...],
                    preferred_element_type=jnp.float32)       # (c2, nc*c2)
        # diagonal (c == c') extraction via mask + cross-sublane reduce
        r = jnp.sum(g * diag_ref[...], axis=0, keepdims=True)  # (1, nc*c2)
        # regroup the per-channel contributions per class (tiny 0/1 matmul)
        logits = jnp.dot(r, q_ref[...],
                         preferred_element_type=jnp.float32) + bfc_ref[...]
        rows.append(logits)                                    # (1, NC_PAD)

    # One sublane- and lane-dense store for the whole block.
    o_ref[...] = jnp.concatenate(rows, axis=0)                 # (nb, NC_PAD)


# ---------------------------------------------------------------------------
# Host-side, one-time parameter / constant preparation
# ---------------------------------------------------------------------------
def _pool_pad_select(ho, wo, wp_in, lm):
    """0/1 matrix mapping the pooled value at base column 2*yo*wp_in + 2*xo to
    the zero-padded flat position (yo+1)*(wo+2) + (xo+1)."""
    wp_out = wo + 2
    sel = np.zeros((lm, (ho + 2) * wp_out), np.float32)
    for yo in range(ho):
        for xo in range(wo):
            sel[2 * yo * wp_in + 2 * xo, (yo + 1) * wp_out + (xo + 1)] = 1.0
    return sel


def prepare_params(params, H=28, W=28):
    """Convert PyTorch-layout params (OIHW conv, (out,in) Linear) to kernel layouts."""
    w1 = np.asarray(params["w1"], np.float32)       # (c1, cin, 3, 3)
    b1 = np.asarray(params["b1"], np.float32)
    w2 = np.asarray(params["w2"], np.float32)       # (c2, c1, 3, 3)
    b2 = np.asarray(params["b2"], np.float32)
    wfc = np.asarray(params["wfc"], np.float32)     # (nc, c2*Hq*Wq)
    bfc = np.asarray(params["bfc"], np.float32)
    c1, cin = w1.shape[0], w1.shape[1]
    c2 = w2.shape[0]
    nc = wfc.shape[0]
    Ho, Wo, Hq, Wq = H // 2, W // 2, H // 4, W // 4
    Wp1, Wp2 = W + 2, Wo + 2
    Lm1 = 2 * (Ho - 1) * Wp1 + 2 * (Wo - 1) + 1
    Lm2 = 2 * (Hq - 1) * Wp2 + 2 * (Wq - 1) + 1
    assert wfc.shape[1] == c2 * Hq * Wq
    assert nc <= NC_PAD

    # Conv1 taps packed along the last / K axis, k = dy*3 + dx.
    w1_flat = np.transpose(w1, (0, 2, 3, 1)).reshape(c1, 9 * cin)
    w1_k = jnp.asarray(w1_flat, jnp.float32 if cin == 1 else jnp.bfloat16)
    b1_k = jnp.asarray(b1.reshape(c1, 1), jnp.float32)

    # Conv2 folded into a single K = 9*c1 matmul: column index = k*c1 + j.
    w2_k = jnp.asarray(np.transpose(w2, (0, 2, 3, 1)).reshape(c2, 9 * c1),
                       jnp.bfloat16)
    b2_k = jnp.asarray(b2.reshape(c2, 1), jnp.float32)

    # Pool1 select: downsample + re-pad (0/1, exact in bf16).
    # (If sel1's K ever dominates on v5e it can be trimmed to pool-base rows.)
    sel1 = jnp.asarray(_pool_pad_select(Ho, Wo, Wp1, Lm1), jnp.bfloat16)

    # Pool2-select folded with the FC weights (PyTorch (c, y, x) flatten order):
    #   wn[q, n*c2 + c] = wfc[n, c*Hq*Wq + yq*Wq + xq]   with q = 2*yq*Wp2 + 2*xq
    wfc4 = wfc.reshape(nc, c2, Hq, Wq)
    wn = np.zeros((Lm2, nc * c2), np.float32)
    for yq in range(Hq):
        for xq in range(Wq):
            wn[2 * yq * Wp2 + 2 * xq, :] = wfc4[:, :, yq, xq].reshape(nc * c2)
    wn_k = jnp.asarray(wn, jnp.bfloat16)

    # Diagonal-extraction mask and per-class regroup matrix (both tiny, 0/1).
    diag = np.zeros((c2, nc * c2), np.float32)
    qmat = np.zeros((nc * c2, NC_PAD), np.float32)
    for n in range(nc):
        for c in range(c2):
            diag[c, n * c2 + c] = 1.0
            qmat[n * c2 + c, n] = 1.0
    bfc_k = np.zeros((1, NC_PAD), np.float32)
    bfc_k[0, :nc] = bfc

    return {"w1": w1_k, "b1": b1_k, "w2": w2_k, "b2": b2_k, "sel1": sel1,
            "wn": wn_k, "diag": jnp.asarray(diag), "q": jnp.asarray(qmat),
            "bfc": jnp.asarray(bfc_k)}


# ---------------------------------------------------------------------------
# Forward pass (matches ConvNet.forward semantics)
# ---------------------------------------------------------------------------
@functools.partial(jax.jit, static_argnames=("num_classes", "b_blk"))
def convnet_forward(x_nchw, kp, *, num_classes=4, b_blk=16):
    B, cin, H, W = x_nchw.shape
    assert H % 4 == 0 and W % 4 == 0, "two 2x2 pools require H, W divisible by 4"
    c1 = kp["b1"].shape[0]
    c2 = kp["b2"].shape[0]
    Hp1, Wp1 = H + 2, W + 2

    # Images per grid step (amortizes per-step overhead, feeds both v7x TCs).
    nb = B if B <= b_blk else b_blk
    if B > b_blk:
        assert b_blk % 8 == 0, "b_blk must be a multiple of 8 when batching"
    Bp = ((B + nb - 1) // nb) * nb

    # Host-side prep stays entirely in bf16 (halves prep HBM traffic vs f32).
    xb = x_nchw.astype(jnp.bfloat16)
    if Bp != B:
        xb = jnp.pad(xb, ((0, Bp - B), (0, 0), (0, 0), (0, 0)))
    xflat = jnp.pad(xb, ((0, 0), (0, 0), (1, 1), (1, 1))).reshape(
        Bp, cin, Hp1 * Wp1)
    # TODO(synk): the border pad + flatten could be folded into the kernel by
    # DMA-ing unpadded rows into a zero-initialized VMEM scratch.

    kernel = functools.partial(_fused_convnet_kernel,
                               cin=cin, c1=c1, c2=c2, H=H, W=W, nb=nb)

    def full(arr):  # weight / constant: single resident block
        nd = arr.ndim
        return pl.BlockSpec(arr.shape, lambda g, _nd=nd: (0,) * _nd)

    out = pl.pallas_call(
        kernel,
        out_shape=jax.ShapeDtypeStruct((Bp, NC_PAD), jnp.float32),
        grid=(Bp // nb,),
        in_specs=[
            pl.BlockSpec((nb, cin, Hp1 * Wp1), lambda g: (g, 0, 0)),
            full(kp["w1"]), full(kp["b1"]), full(kp["w2"]), full(kp["b2"]),
            full(kp["sel1"]), full(kp["wn"]), full(kp["diag"]), full(kp["q"]),
            full(kp["bfc"]),
        ],
        out_specs=pl.BlockSpec((nb, NC_PAD), lambda g: (g, 0)),
        compiler_params=pltpu.CompilerParams(
            dimension_semantics=("parallel",)),
    )(xflat, kp["w1"], kp["b1"], kp["w2"], kp["b2"],
      kp["sel1"], kp["wn"], kp["diag"], kp["q"], kp["bfc"])

    return out[:B, :num_classes]


# ---------------------------------------------------------------------------
# Parameters (deterministic, synthetic — PyTorch layouts) and a pure-JAX ref
# ---------------------------------------------------------------------------
def init_params(key, in_channels=1, num_classes=4):
    k1, k2, k3, k4, k5, k6 = jax.random.split(key, 6)
    return {
        "w1": 0.10 * jax.random.normal(k1, (8, in_channels, 3, 3), jnp.float32),
        "b1": 0.10 * jax.random.normal(k2, (8,), jnp.float32),
        "w2": 0.10 * jax.random.normal(k3, (16, 8, 3, 3), jnp.float32),
        "b2": 0.10 * jax.random.normal(k4, (16,), jnp.float32),
        "wfc": 0.05 * jax.random.normal(k5, (num_classes, 16 * 7 * 7), jnp.float32),
        "bfc": 0.05 * jax.random.normal(k6, (num_classes,), jnp.float32),
    }


def convnet_reference(x_nchw, params):
    """Pure-JAX/XLA reference with the exact PyTorch ConvNet semantics."""
    dn = ("NCHW", "OIHW", "NCHW")
    x = x_nchw.astype(jnp.float32)
    x = lax.conv_general_dilated(x, params["w1"], (1, 1), ((1, 1), (1, 1)),
                                 dimension_numbers=dn)
    x = jax.nn.relu(x + params["b1"][None, :, None, None])
    x = lax.reduce_window(x, -jnp.inf, lax.max, (1, 1, 2, 2), (1, 1, 2, 2), "VALID")
    x = lax.conv_general_dilated(x, params["w2"], (1, 1), ((1, 1), (1, 1)),
                                 dimension_numbers=dn)
    x = jax.nn.relu(x + params["b2"][None, :, None, None])
    x = lax.reduce_window(x, -jnp.inf, lax.max, (1, 1, 2, 2), (1, 1, 2, 2), "VALID")
    x = x.reshape(x.shape[0], -1)
    return x @ params["wfc"].T + params["bfc"]


if __name__ == "__main__":
    key = jax.random.PRNGKey(0)
    kx, kp_key = jax.random.split(key)
    # 28x28 spatial input with 1 channel is implied by the 16*7*7 FC layer.
    params = init_params(kp_key, in_channels=1, num_classes=4)
    kparams = prepare_params(params, H=28, W=28)

    x = jax.random.normal(kx, (2, 1, 28, 28), jnp.float32)
    logits = jax.block_until_ready(convnet_forward(x, kparams, num_classes=4))
    assert logits.shape == (2, 4), logits.shape
    assert bool(jnp.all(jnp.isfinite(logits)))

    # Correctness vs. the XLA reference (bf16 matmul inputs -> loose tolerance).
    ref = convnet_reference(x, params)
    err = float(jnp.max(jnp.abs(logits - ref)))
    assert err < 0.1, f"max abs error vs reference: {err}"

    # Second check: batch > block exercises padding, grid > 1, parallel axis.
    x2 = jax.random.normal(jax.random.PRNGKey(1), (10, 1, 28, 28), jnp.float32)
    logits2 = jax.block_until_ready(
        convnet_forward(x2, kparams, num_classes=4, b_blk=8))
    ref2 = convnet_reference(x2, params)
    err2 = float(jnp.max(jnp.abs(logits2 - ref2)))
    assert logits2.shape == (10, 4), logits2.shape
    assert err2 < 0.1, f"batched max abs error vs reference: {err2}"

    print("KERNEL_OK")
</pallas_src>

<mosaic_0001>
module attributes {stable_mosaic.version = 11 : i64} {
  func.func @_fused_convnet_kernel(%arg0: i32, %arg1: memref<2x1x900xbf16, #tpu.memory_space<vmem>>, %arg2: memref<8x9xf32, #tpu.memory_space<vmem>>, %arg3: memref<8x1xf32, #tpu.memory_space<vmem>>, %arg4: memref<16x72xbf16, #tpu.memory_space<vmem>>, %arg5: memref<16x1xf32, #tpu.memory_space<vmem>>, %arg6: memref<807x256xbf16, #tpu.memory_space<vmem>>, %arg7: memref<205x64xbf16, #tpu.memory_space<vmem>>, %arg8: memref<16x64xf32, #tpu.memory_space<vmem>>, %arg9: memref<64x128xf32, #tpu.memory_space<vmem>>, %arg10: memref<1x128xf32, #tpu.memory_space<vmem>>, %arg11: memref<2x128xf32, #tpu.memory_space<vmem>>) attributes {dimension_semantics = [#tpu.dimension_semantics<parallel>], iteration_bounds = array<i64: 1>, scalar_prefetch = 0 : i64, scratch_operands = 0 : i64, tpu.core_type = #tpu.core_type<tc>, window_params = [{transform_indices = @transform_0, window_bounds = array<i64: 2, 1, 900>}, {pipeline_mode = #tpu.pipeline_mode<synchronous>, transform_indices = @transform_1, window_bounds = array<i64: 8, 9>}, {pipeline_mode = #tpu.pipeline_mode<synchronous>, transform_indices = @transform_2, window_bounds = array<i64: 8, 1>}, {pipeline_mode = #tpu.pipeline_mode<synchronous>, transform_indices = @transform_3, window_bounds = array<i64: 16, 72>}, {pipeline_mode = #tpu.pipeline_mode<synchronous>, transform_indices = @transform_4, window_bounds = array<i64: 16, 1>}, {pipeline_mode = #tpu.pipeline_mode<synchronous>, transform_indices = @transform_5, window_bounds = array<i64: 807, 256>}, {pipeline_mode = #tpu.pipeline_mode<synchronous>, transform_indices = @transform_6, window_bounds = array<i64: 205, 64>}, {pipeline_mode = #tpu.pipeline_mode<synchronous>, transform_indices = @transform_7, window_bounds = array<i64: 16, 64>}, {pipeline_mode = #tpu.pipeline_mode<synchronous>, transform_indices = @transform_8, window_bounds = array<i64: 64, 128>}, {pipeline_mode = #tpu.pipeline_mode<synchronous>, transform_indices = @transform_9, window_bounds = array<i64: 1, 128>}, {transform_indices = @transform_10, window_bounds = array<i64: 2, 128>}]} {
    %c0 = arith.constant 0 : index
    %c0_0 = arith.constant 0 : index
    %c0_1 = arith.constant 0 : index
    %0 = vector.load %arg1[%c0, %c0_0, %c0_1] : memref<2x1x900xbf16, #tpu.memory_space<vmem>>, vector<1x1x900xbf16>
    %1 = vector.shape_cast %0 : vector<1x1x900xbf16> to vector<1x900xbf16>
    %2 = arith.extf %1 : vector<1x900xbf16> to vector<1x900xf32>
    %3 = vector.shape_cast %2 : vector<1x900xf32> to vector<1x900xf32>
    %4 = vector.broadcast %3 : vector<1x900xf32> to vector<8x900xf32>
    %c0_2 = arith.constant 0 : index
    %c0_3 = arith.constant 0 : index
    %5 = vector.load %arg3[%c0_2, %c0_3] : memref<8x1xf32, #tpu.memory_space<vmem>>, vector<8x1xf32>
    %6 = vector.shape_cast %5 : vector<8x1xf32> to vector<8x1xf32>
    %7 = vector.broadcast %6 : vector<8x1xf32> to vector<8x838xf32>
    %c0_4 = arith.constant 0 : index
    %c0_5 = arith.constant 0 : index
    %8 = vector.load %arg2[%c0_4, %c0_5] : memref<8x9xf32, #tpu.memory_space<vmem>>, vector<8x1xf32>
    %9 = vector.extract_strided_slice %4 {offsets = [0, 0], sizes = [8, 838], strides = [1, 1]} : vector<8x900xf32> to vector<8x838xf32>
    %10 = vector.broadcast %8 : vector<8x1xf32> to vector<8x838xf32>
    %11 = arith.mulf %10, %9 : vector<8x838xf32>
    %12 = arith.addf %7, %11 : vector<8x838xf32>
    %c0_6 = arith.constant 0 : index
    %c1 = arith.constant 1 : index
    %13 = vector.load %arg2[%c0_6, %c1] : memref<8x9xf32, #tpu.memory_space<vmem>>, vector<8x1xf32>
    %14 = vector.extract_strided_slice %4 {offsets = [0, 1], sizes = [8, 838], strides = [1, 1]} : vector<8x900xf32> to vector<8x838xf32>
    %15 = vector.broadcast %13 : vector<8x1xf32> to vector<8x838xf32>
    %16 = arith.mulf %15, %14 : vector<8x838xf32>
    %17 = arith.addf %12, %16 : vector<8x838xf32>
    %c0_7 = arith.constant 0 : index
    %c2 = arith.constant 2 : index
    %18 = vector.load %arg2[%c0_7, %c2] : memref<8x9xf32, #tpu.memory_space<vmem>>, vector<8x1xf32>
    %19 = vector.extract_strided_slice %4 {offsets = [0, 2], sizes = [8, 838], strides = [1, 1]} : vector<8x900xf32> to vector<8x838xf32>
    %20 = vector.broadcast %18 : vector<8x1xf32> to vector<8x838xf32>
    %21 = arith.mulf %20, %19 : vector<8x838xf32>
    %22 = arith.addf %17, %21 : vector<8x838xf32>
    %c0_8 = arith.constant 0 : index
    %c3 = arith.constant 3 : index
    %23 = vector.load %arg2[%c0_8, %c3] : memref<8x9xf32, #tpu.memory_space<vmem>>, vector<8x1xf32>
    %24 = vector.extract_strided_slice %4 {offsets = [0, 30], sizes = [8, 838], strides = [1, 1]} : vector<8x900xf32> to vector<8x838xf32>
    %25 = vector.broadcast %23 : vector<8x1xf32> to vector<8x838xf32>
    %26 = arith.mulf %25, %24 : vector<8x838xf32>
    %27 = arith.addf %22, %26 : vector<8x838xf32>
    %c0_9 = arith.constant 0 : index
    %c4 = arith.constant 4 : index
    %28 = vector.load %arg2[%c0_9, %c4] : memref<8x9xf32, #tpu.memory_space<vmem>>, vector<8x1xf32>
    %29 = vector.extract_strided_slice %4 {offsets = [0, 31], sizes = [8, 838], strides = [1, 1]} : vector<8x900xf32> to vector<8x838xf32>
    %30 = vector.broadcast %28 : vector<8x1xf32> to vector<8x838xf32>
    %31 = arith.mulf %30, %29 : vector<8x838xf32>
    %32 = arith.addf %27, %31 : vector<8x838xf32>
    %c0_10 = arith.constant 0 : index
    %c5 = arith.constant 5 : index
    %33 = vector.load %arg2[%c0_10, %c5] : memref<8x9xf32, #tpu.memory_space<vmem>>, vector<8x1xf32>
    %34 = vector.extract_strided_slice %4 {offsets = [0, 32], sizes = [8, 838], strides = [1, 1]} : vector<8x900xf32> to vector<8x838xf32>
    %35 = vector.broadcast %33 : vector<8x1xf32> to vector<8x838xf32>
    %36 = arith.mulf %35, %34 : vector<8x838xf32>
    %37 = arith.addf %32, %36 : vector<8x838xf32>
    %c0_11 = arith.constant 0 : index
    %c6 = arith.constant 6 : index
    %38 = vector.load %arg2[%c0_11, %c6] : memref<8x9xf32, #tpu.memory_space<vmem>>, vector<8x1xf32>
    %39 = vector.extract_strided_slice %4 {offsets = [0, 60], sizes = [8, 838], strides = [1, 1]} : vector<8x900xf32> to vector<8x838xf32>
    %40 = vector.broadcast %38 : vector<8x1xf32> to vector<8x838xf32>
    %41 = arith.mulf %40, %39 : vector<8x838xf32>
    %42 = arith.addf %37, %41 : vector<8x838xf32>
    %c0_12 = arith.constant 0 : index
    %c7 = arith.constant 7 : index
    %43 = vector.load %arg2[%c0_12, %c7] : memref<8x9xf32, #tpu.memory_space<vmem>>, vector<8x1xf32>
    %44 = vector.extract_strided_slice %4 {offsets = [0, 61], sizes = [8, 838], strides = [1, 1]} : vector<8x900xf32> to vector<8x838xf32>
    %45 = vector.broadcast %43 : vector<8x1xf32> to vector<8x838xf32>
    %46 = arith.mulf %45, %44 : vector<8x838xf32>
    %47 = arith.addf %42, %46 : vector<8x838xf32>
    %c0_13 = arith.constant 0 : index
    %c8 = arith.constant 8 : index
    %48 = vector.load %arg2[%c0_13, %c8] : memref<8x9xf32, #tpu.memory_space<vmem>>, vector<8x1xf32>
    %49 = vector.extract_strided_slice %4 {offsets = [0, 62], sizes = [8, 838], strides = [1, 1]} : vector<8x900xf32> to vector<8x838xf32>
    %50 = vector.broadcast %48 : vector<8x1xf32> to vector<8x838xf32>
    %51 = arith.mulf %50, %49 : vector<8x838xf32>
    %52 = arith.addf %47, %51 : vector<8x838xf32>
    %cst = arith.constant 0.000000e+00 : f32
    %53 = vector.broadcast %cst : f32 to vector<8x838xf32>
    %54 = arith.maximumf %52, %53 : vector<8x838xf32>
    %55 = vector.extract_strided_slice %54 {offsets = [0, 0], sizes = [8, 807], strides = [1, 1]} : vector<8x838xf32> to vector<8x807xf32>
    %56 = vector.extract_strided_slice %54 {offsets = [0, 1], sizes = [8, 807], strides = [1, 1]} : vector<8x838xf32> to vector<8x807xf32>
    %57 = arith.maximumf %55, %56 : vector<8x807xf32>
    %58 = vector.extract_strided_slice %54 {offsets = [0, 30], sizes = [8, 807], strides = [1, 1]} : vector<8x838xf32> to vector<8x807xf32>
    %59 = vector.extract_strided_slice %54 {offsets = [0, 31], sizes = [8, 807], strides = [1, 1]} : vector<8x838xf32> to vector<8x807xf32>
    %60 = arith.maximumf %58, %59 : vector<8x807xf32>
    %61 = arith.maximumf %57, %60 : vector<8x807xf32>
    %62 = arith.truncf %61 : vector<8x807xf32> to vector<8x807xbf16>
    %c0_14 = arith.constant 0 : index
    %c0_15 = arith.constant 0 : index
    %63 = vector.load %arg6[%c0_14, %c0_15] : memref<807x256xbf16, #tpu.memory_space<vmem>>, vector<807x256xbf16>
    %cst_16 = arith.constant dense<0.000000e+00> : vector<8x256xf32>
    %64 = tpu.matmul %62, %63, %cst_16 {dimension_numbers = #tpu.dot_dimension_numbers<[1], [0], [0], [1], [0, 0, 1, 1], [], []>} : vector<8x807xbf16>, vector<807x256xbf16>, vector<8x256xf32> -> vector<8x256xf32>
    %65 = arith.truncf %64 : vector<8x256xf32> to vector<8x256xbf16>
    %66 = vector.extract_strided_slice %65 {offsets = [0, 0], sizes = [8, 222], strides = [1, 1]} : vector<8x256xbf16> to vector<8x222xbf16>
    %67 = vector.extract_strided_slice %65 {offsets = [0, 1], sizes = [8, 222], strides = [1, 1]} : vector<8x256xbf16> to vector<8x222xbf16>
    %68 = vector.extract_strided_slice %65 {offsets = [0, 2], sizes = [8, 222], strides = [1, 1]} : vector<8x256xbf16> to vector<8x222xbf16>
    %69 = vector.extract_strided_slice %65 {offsets = [0, 16], sizes = [8, 222], strides = [1, 1]} : vector<8x256xbf16> to vector<8x222xbf16>
    %70 = vector.extract_strided_slice %65 {offsets = [0, 17], sizes = [8, 222], strides = [1, 1]} : vector<8x256xbf16> to vector<8x222xbf16>
    %71 = vector.extract_strided_slice %65 {offsets = [0, 18], sizes = [8, 222], strides = [1, 1]} : vector<8x256xbf16> to vector<8x222xbf16>
    %72 = vector.extract_strided_slice %65 {offsets = [0, 32], sizes = [8, 222], strides = [1, 1]} : vector<8x256xbf16> to vector<8x222xbf16>
    %73 = vector.extract_strided_slice %65 {offsets = [0, 33], sizes = [8, 222], strides = [1, 1]} : vector<8x256xbf16> to vector<8x222xbf16>
    %74 = vector.extract_strided_slice %65 {offsets = [0, 34], sizes = [8, 222], strides = [1, 1]} : vector<8x256xbf16> to vector<8x222xbf16>
    %75 = tpu.concatenate %66, %67, %68, %69, %70, %71, %72, %73, %74 in 0 : vector<8x222xbf16>, vector<8x222xbf16>, vector<8x222xbf16>, vector<8x222xbf16>, vector<8x222xbf16>, vector<8x222xbf16>, vector<8x222xbf16>, vector<8x222xbf16>, vector<8x222xbf16> -> vector<72x222xbf16>
    %c0_17 = arith.constant 0 : index
    %c0_18 = arith.constant 0 : index
    %76 = vector.load %arg4[%c0_17, %c0_18] : memref<16x72xbf16, #tpu.memory_space<vmem>>, vector<16x72xbf16>
    %cst_19 = arith.constant dense<0.000000e+00> : vector<16x222xf32>
    %77 = tpu.matmul %76, %75, %cst_19 {dimension_numbers = #tpu.dot_dimension_numbers<[1], [0], [0], [1], [0, 0, 1, 1], [], []>} : vector<16x72xbf16>, vector<72x222xbf16>, vector<16x222xf32> -> vector<16x222xf32>
    %c0_20 = arith.constant 0 : index
    %c0_21 = arith.constant 0 : index
    %78 = vector.load %arg5[%c0_20, %c0_21] : memref<16x1xf32, #tpu.memory_space<vmem>>, vector<16x1xf32>
    %79 = vector.broadcast %78 : vector<16x1xf32> to vector<16x222xf32>
    %80 = arith.addf %77, %79 : vector<16x222xf32>
    %cst_22 = arith.constant 0.000000e+00 : f32
    %81 = vector.broadcast %cst_22 : f32 to vector<16x222xf32>
    %82 = arith.maximumf %80, %81 : vector<16x222xf32>
    %83 = vector.extract_strided_slice %82 {offsets = [0, 0], sizes = [16, 205], strides = [1, 1]} : vector<16x222xf32> to vector<16x205xf32>
    %84 = vector.extract_strided_slice %82 {offsets = [0, 1], sizes = [16, 205], strides = [1, 1]} : vector<16x222xf32> to vector<16x205xf32>
    %85 = arith.maximumf %83, %84 : vector<16x205xf32>
    %86 = vector.extract_strided_slice %82 {offsets = [0, 16], sizes = [16, 205], strides = [1, 1]} : vector<16x222xf32> to vector<16x205xf32>
    %87 = vector.extract_strided_slice %82 {offsets = [0, 17], sizes = [16, 205], strides = [1, 1]} : vector<16x222xf32> to vector<16x205xf32>
    %88 = arith.maximumf %86, %87 : vector<16x205xf32>
    %89 = arith.maximumf %85, %88 : vector<16x205xf32>
    %90 = arith.truncf %89 : vector<16x205xf32> to vector<16x205xbf16>
    %c0_23 = arith.constant 0 : index
    %c0_24 = arith.constant 0 : index
    %91 = vector.load %arg7[%c0_23, %c0_24] : memref<205x64xbf16, #tpu.memory_space<vmem>>, vector<205x64xbf16>
    %cst_25 = arith.constant dense<0.000000e+00> : vector<16x64xf32>
    %92 = tpu.matmul %90, %91, %cst_25 {dimension_numbers = #tpu.dot_dimension_numbers<[1], [0], [0], [1], [0, 0, 1, 1], [], []>} : vector<16x205xbf16>, vector<205x64xbf16>, vector<16x64xf32> -> vector<16x64xf32>
    %c0_26 = arith.constant 0 : index
    %c0_27 = arith.constant 0 : index
    %93 = vector.load %arg8[%c0_26, %c0_27] : memref<16x64xf32, #tpu.memory_space<vmem>>, vector<16x64xf32>
    %94 = arith.mulf %92, %93 : vector<16x64xf32>
    %cst_28 = arith.constant dense<0.000000e+00> : vector<64xf32>
    %95 = vector.multi_reduction <add>, %94, %cst_28 [0] : vector<16x64xf32> to vector<64xf32>
    %96 = vector.shape_cast %95 : vector<64xf32> to vector<1x64xf32>
    %c0_29 = arith.constant 0 : index
    %c0_30 = arith.constant 0 : index
    %97 = vector.load %arg9[%c0_29, %c0_30] : memref<64x128xf32, #tpu.memory_space<vmem>>, vector<64x128xf32>
    %cst_31 = arith.constant dense<0.000000e+00> : vector<1x128xf32>
    %98 = tpu.matmul %96, %97, %cst_31 {dimension_numbers = #tpu.dot_dimension_numbers<[1], [0], [0], [1], [0, 0, 1, 1], [], []>} : vector<1x64xf32>, vector<64x128xf32>, vector<1x128xf32> -> vector<1x128xf32>
    %c0_32 = arith.constant 0 : index
    %c0_33 = arith.constant 0 : index
    %99 = vector.load %arg10[%c0_32, %c0_33] : memref<1x128xf32, #tpu.memory_space<vmem>>, vector<1x128xf32>
    %100 = arith.addf %98, %99 : vector<1x128xf32>
    %c1_34 = arith.constant 1 : index
    %c0_35 = arith.constant 0 : index
    %c0_36 = arith.constant 0 : index
    %101 = vector.load %arg1[%c1_34, %c0_35, %c0_36] : memref<2x1x900xbf16, #tpu.memory_space<vmem>>, vector<1x1x900xbf16>
    %102 = vector.shape_cast %101 : vector<1x1x900xbf16> to vector<1x900xbf16>
    %103 = arith.extf %102 : vector<1x900xbf16> to vector<1x900xf32>
    %104 = vector.shape_cast %103 : vector<1x900xf32> to vector<1x900xf32>
    %105 = vector.broadcast %104 : vector<1x900xf32> to vector<8x900xf32>
    %c0_37 = arith.constant 0 : index
    %c0_38 = arith.constant 0 : index
    %106 = vector.load %arg3[%c0_37, %c0_38] : memref<8x1xf32, #tpu.memory_space<vmem>>, vector<8x1xf32>
    %107 = vector.shape_cast %106 : vector<8x1xf32> to vector<8x1xf32>
    %108 = vector.broadcast %107 : vector<8x1xf32> to vector<8x838xf32>
    %c0_39 = arith.constant 0 : index
    %c0_40 = arith.constant 0 : index
    %109 = vector.load %arg2[%c0_39, %c0_40] : memref<8x9xf32, #tpu.memory_space<vmem>>, vector<8x1xf32>
    %110 = vector.extract_strided_slice %105 {offsets = [0, 0], sizes = [8, 838], strides = [1, 1]} : vector<8x900xf32> to vector<8x838xf32>
    %111 = vector.broadcast %109 : vector<8x1xf32> to vector<8x838xf32>
    %112 = arith.mulf %111, %110 : vector<8x838xf32>
    %113 = arith.addf %108, %112 : vector<8x838xf32>
    %c0_41 = arith.constant 0 : index
    %c1_42 = arith.constant 1 : index
    %114 = vector.load %arg2[%c0_41, %c1_42] : memref<8x9xf32, #tpu.memory_space<vmem>>, vector<8x1xf32>
    %115 = vector.extract_strided_slice %105 {offsets = [0, 1], sizes = [8, 838], strides = [1, 1]} : vector<8x900xf32> to vector<8x838xf32>
    %116 = vector.broadcast %114 : vector<8x1xf32> to vector<8x838xf32>
    %117 = arith.mulf %116, %115 : vector<8x838xf32>
    %118 = arith.addf %113, %117 : vector<8x838xf32>
    %c0_43 = arith.constant 0 : index
    %c2_44 = arith.constant 2 : index
    %119 = vector.load %arg2[%c0_43, %c2_44] : memref<8x9xf32, #tpu.memory_space<vmem>>, vector<8x1xf32>
    %120 = vector.extract_strided_slice %105 {offsets = [0, 2], sizes = [8, 838], strides = [1, 1]} : vector<8x900xf32> to vector<8x838xf32>
    %121 = vector.broadcast %119 : vector<8x1xf32> to vector<8x838xf32>
    %122 = arith.mulf %121, %120 : vector<8x838xf32>
    %123 = arith.addf %118, %122 : vector<8x838xf32>
    %c0_45 = arith.constant 0 : index
    %c3_46 = arith.constant 3 : index
    %124 = vector.load %arg2[%c0_45, %c3_46] : memref<8x9xf32, #tpu.memory_space<vmem>>, vector<8x1xf32>
    %125 = vector.extract_strided_slice %105 {offsets = [0, 30], sizes = [8, 838], strides = [1, 1]} : vector<8x900xf32> to vector<8x838xf32>
    %126 = vector.broadcast %124 : vector<8x1xf32> to vector<8x838xf32>
    %127 = arith.mulf %126, %125 : vector<8x838xf32>
    %128 = arith.addf %123, %127 : vector<8x838xf32>
    %c0_47 = arith.constant 0 : index
    %c4_48 = arith.constant 4 : index
    %129 = vector.load %arg2[%c0_47, %c4_48] : memref<8x9xf32, #tpu.memory_space<vmem>>, vector<8x1xf32>
    %130 = vector.extract_strided_slice %105 {offsets = [0, 31], sizes = [8, 838], strides = [1, 1]} : vector<8x900xf32> to vector<8x838xf32>
    %131 = vector.broadcast %129 : vector<8x1xf32> to vector<8x838xf32>
    %132 = arith.mulf %131, %130 : vector<8x838xf32>
    %133 = arith.addf %128, %132 : vector<8x838xf32>
    %c0_49 = arith.constant 0 : index
    %c5_50 = arith.constant 5 : index
    %134 = vector.load %arg2[%c0_49, %c5_50] : memref<8x9xf32, #tpu.memory_space<vmem>>, vector<8x1xf32>
    %135 = vector.extract_strided_slice %105 {offsets = [0, 32], sizes = [8, 838], strides = [1, 1]} : vector<8x900xf32> to vector<8x838xf32>
    %136 = vector.broadcast %134 : vector<8x1xf32> to vector<8x838xf32>
    %137 = arith.mulf %136, %135 : vector<8x838xf32>
    %138 = arith.addf %133, %137 : vector<8x838xf32>
    %c0_51 = arith.constant 0 : index
    %c6_52 = arith.constant 6 : index
    %139 = vector.load %arg2[%c0_51, %c6_52] : memref<8x9xf32, #tpu.memory_space<vmem>>, vector<8x1xf32>
    %140 = vector.extract_strided_slice %105 {offsets = [0, 60], sizes = [8, 838], strides = [1, 1]} : vector<8x900xf32> to vector<8x838xf32>
    %141 = vector.broadcast %139 : vector<8x1xf32> to vector<8x838xf32>
    %142 = arith.mulf %141, %140 : vector<8x838xf32>
    %143 = arith.addf %138, %142 : vector<8x838xf32>
    %c0_53 = arith.constant 0 : index
    %c7_54 = arith.constant 7 : index
    %144 = vector.load %arg2[%c0_53, %c7_54] : memref<8x9xf32, #tpu.memory_space<vmem>>, vector<8x1xf32>
    %145 = vector.extract_strided_slice %105 {offsets = [0, 61], sizes = [8, 838], strides = [1, 1]} : vector<8x900xf32> to vector<8x838xf32>
    %146 = vector.broadcast %144 : vector<8x1xf32> to vector<8x838xf32>
    %147 = arith.mulf %146, %145 : vector<8x838xf32>
    %148 = arith.addf %143, %147 : vector<8x838xf32>
    %c0_55 = arith.constant 0 : index
    %c8_56 = arith.constant 8 : index
    %149 = vector.load %arg2[%c0_55, %c8_56] : memref<8x9xf32, #tpu.memory_space<vmem>>, vector<8x1xf32>
    %150 = vector.extract_strided_slice %105 {offsets = [0, 62], sizes = [8, 838], strides = [1, 1]} : vector<8x900xf32> to vector<8x838xf32>
    %151 = vector.broadcast %149 : vector<8x1xf32> to vector<8x838xf32>
    %152 = arith.mulf %151, %150 : vector<8x838xf32>
    %153 = arith.addf %148, %152 : vector<8x838xf32>
    %cst_57 = arith.constant 0.000000e+00 : f32
    %154 = vector.broadcast %cst_57 : f32 to vector<8x838xf32>
    %155 = arith.maximumf %153, %154 : vector<8x838xf32>
    %156 = vector.extract_strided_slice %155 {offsets = [0, 0], sizes = [8, 807], strides = [1, 1]} : vector<8x838xf32> to vector<8x807xf32>
    %157 = vector.extract_strided_slice %155 {offsets = [0, 1], sizes = [8, 807], strides = [1, 1]} : vector<8x838xf32> to vector<8x807xf32>
    %158 = arith.maximumf %156, %157 : vector<8x807xf32>
    %159 = vector.extract_strided_slice %155 {offsets = [0, 30], sizes = [8, 807], strides = [1, 1]} : vector<8x838xf32> to vector<8x807xf32>
    %160 = vector.extract_strided_slice %155 {offsets = [0, 31], sizes = [8, 807], strides = [1, 1]} : vector<8x838xf32> to vector<8x807xf32>
    %161 = arith.maximumf %159, %160 : vector<8x807xf32>
    %162 = arith.maximumf %158, %161 : vector<8x807xf32>
    %163 = arith.truncf %162 : vector<8x807xf32> to vector<8x807xbf16>
    %c0_58 = arith.constant 0 : index
    %c0_59 = arith.constant 0 : index
    %164 = vector.load %arg6[%c0_58, %c0_59] : memref<807x256xbf16, #tpu.memory_space<vmem>>, vector<807x256xbf16>
    %cst_60 = arith.constant dense<0.000000e+00> : vector<8x256xf32>
    %165 = tpu.matmul %163, %164, %cst_60 {dimension_numbers = #tpu.dot_dimension_numbers<[1], [0], [0], [1], [0, 0, 1, 1], [], []>} : vector<8x807xbf16>, vector<807x256xbf16>, vector<8x256xf32> -> vector<8x256xf32>
    %166 = arith.truncf %165 : vector<8x256xf32> to vector<8x256xbf16>
    %167 = vector.extract_strided_slice %166 {offsets = [0, 0], sizes = [8, 222], strides = [1, 1]} : vector<8x256xbf16> to vector<8x222xbf16>
    %168 = vector.extract_strided_slice %166 {offsets = [0, 1], sizes = [8, 222], strides = [1, 1]} : vector<8x256xbf16> to vector<8x222xbf16>
    %169 = vector.extract_strided_slice %166 {offsets = [0, 2], sizes = [8, 222], strides = [1, 1]} : vector<8x256xbf16> to vector<8x222xbf16>
    %170 = vector.extract_strided_slice %166 {offsets = [0, 16], sizes = [8, 222], strides = [1, 1]} : vector<8x256xbf16> to vector<8x222xbf16>
    %171 = vector.extract_strided_slice %166 {offsets = [0, 17], sizes = [8, 222], strides = [1, 1]} : vector<8x256xbf16> to vector<8x222xbf16>
    %172 = vector.extract_strided_slice %166 {offsets = [0, 18], sizes = [8, 222], strides = [1, 1]} : vector<8x256xbf16> to vector<8x222xbf16>
    %173 = vector.extract_strided_slice %166 {offsets = [0, 32], sizes = [8, 222], strides = [1, 1]} : vector<8x256xbf16> to vector<8x222xbf16>
    %174 = vector.extract_strided_slice %166 {offsets = [0, 33], sizes = [8, 222], strides = [1, 1]} : vector<8x256xbf16> to vector<8x222xbf16>
    %175 = vector.extract_strided_slice %166 {offsets = [0, 34], sizes = [8, 222], strides = [1, 1]} : vector<8x256xbf16> to vector<8x222xbf16>
    %176 = tpu.concatenate %167, %168, %169, %170, %171, %172, %173, %174, %175 in 0 : vector<8x222xbf16>, vector<8x222xbf16>, vector<8x222xbf16>, vector<8x222xbf16>, vector<8x222xbf16>, vector<8x222xbf16>, vector<8x222xbf16>, vector<8x222xbf16>, vector<8x222xbf16> -> vector<72x222xbf16>
    %c0_61 = arith.constant 0 : index
    %c0_62 = arith.constant 0 : index
    %177 = vector.load %arg4[%c0_61, %c0_62] : memref<16x72xbf16, #tpu.memory_space<vmem>>, vector<16x72xbf16>
    %cst_63 = arith.constant dense<0.000000e+00> : vector<16x222xf32>
    %178 = tpu.matmul %177, %176, %cst_63 {dimension_numbers = #tpu.dot_dimension_numbers<[1], [0], [0], [1], [0, 0, 1, 1], [], []>} : vector<16x72xbf16>, vector<72x222xbf16>, vector<16x222xf32> -> vector<16x222xf32>
    %c0_64 = arith.constant 0 : index
    %c0_65 = arith.constant 0 : index
    %179 = vector.load %arg5[%c0_64, %c0_65] : memref<16x1xf32, #tpu.memory_space<vmem>>, vector<16x1xf32>
    %180 = vector.broadcast %179 : vector<16x1xf32> to vector<16x222xf32>
    %181 = arith.addf %178, %180 : vector<16x222xf32>
    %cst_66 = arith.constant 0.000000e+00 : f32
    %182 = vector.broadcast %cst_66 : f32 to vector<16x222xf32>
    %183 = arith.maximumf %181, %182 : vector<16x222xf32>
    %184 = vector.extract_strided_slice %183 {offsets = [0, 0], sizes = [16, 205], strides = [1, 1]} : vector<16x222xf32> to vector<16x205xf32>
    %185 = vector.extract_strided_slice %183 {offsets = [0, 1], sizes = [16, 205], strides = [1, 1]} : vector<16x222xf32> to vector<16x205xf32>
    %186 = arith.maximumf %184, %185 : vector<16x205xf32>
    %187 = vector.extract_strided_slice %183 {offsets = [0, 16], sizes = [16, 205], strides = [1, 1]} : vector<16x222xf32> to vector<16x205xf32>
    %188 = vector.extract_strided_slice %183 {offsets = [0, 17], sizes = [16, 205], strides = [1, 1]} : vector<16x222xf32> to vector<16x205xf32>
    %189 = arith.maximumf %187, %188 : vector<16x205xf32>
    %190 = arith.maximumf %186, %189 : vector<16x205xf32>
    %191 = arith.truncf %190 : vector<16x205xf32> to vector<16x205xbf16>
    %c0_67 = arith.constant 0 : index
    %c0_68 = arith.constant 0 : index
    %192 = vector.load %arg7[%c0_67, %c0_68] : memref<205x64xbf16, #tpu.memory_space<vmem>>, vector<205x64xbf16>
    %cst_69 = arith.constant dense<0.000000e+00> : vector<16x64xf32>
    %193 = tpu.matmul %191, %192, %cst_69 {dimension_numbers = #tpu.dot_dimension_numbers<[1], [0], [0], [1], [0, 0, 1, 1], [], []>} : vector<16x205xbf16>, vector<205x64xbf16>, vector<16x64xf32> -> vector<16x64xf32>
    %c0_70 = arith.constant 0 : index
    %c0_71 = arith.constant 0 : index
    %194 = vector.load %arg8[%c0_70, %c0_71] : memref<16x64xf32, #tpu.memory_space<vmem>>, vector<16x64xf32>
    %195 = arith.mulf %193, %194 : vector<16x64xf32>
    %cst_72 = arith.constant dense<0.000000e+00> : vector<64xf32>
    %196 = vector.multi_reduction <add>, %195, %cst_72 [0] : vector<16x64xf32> to vector<64xf32>
    %197 = vector.shape_cast %196 : vector<64xf32> to vector<1x64xf32>
    %c0_73 = arith.constant 0 : index
    %c0_74 = arith.constant 0 : index
    %198 = vector.load %arg9[%c0_73, %c0_74] : memref<64x128xf32, #tpu.memory_space<vmem>>, vector<64x128xf32>
    %cst_75 = arith.constant dense<0.000000e+00> : vector<1x128xf32>
    %199 = tpu.matmul %197, %198, %cst_75 {dimension_numbers = #tpu.dot_dimension_numbers<[1], [0], [0], [1], [0, 0, 1, 1], [], []>} : vector<1x64xf32>, vector<64x128xf32>, vector<1x128xf32> -> vector<1x128xf32>
    %c0_76 = arith.constant 0 : index
    %c0_77 = arith.constant 0 : index
    %200 = vector.load %arg10[%c0_76, %c0_77] : memref<1x128xf32, #tpu.memory_space<vmem>>, vector<1x128xf32>
    %201 = arith.addf %199, %200 : vector<1x128xf32>
    %202 = tpu.concatenate %100, %201 in 0 : vector<1x128xf32>, vector<1x128xf32> -> vector<2x128xf32>
    %c0_78 = arith.constant 0 : index
    %c0_79 = arith.constant 0 : index
    %203 = vector.load %arg11[%c0_78, %c0_79] : memref<2x128xf32, #tpu.memory_space<vmem>>, vector<2x128xf32>
    tpu.vector_store %arg11[%c0_78, %c0_79], %202 {strides = array<i32>} : memref<2x128xf32, #tpu.memory_space<vmem>>, vector<2x128xf32>,
    return
  }
  func.func @transform_0(%arg0: i32) -> (i32, i32, i32) {
    %c0_i32 = arith.constant 0 : i32
    %c0_i32_0 = arith.constant 0 : i32
    %c0_i32_1 = arith.constant 0 : i32
    return %arg0, %c0_i32, %c0_i32_0 : i32, i32, i32
  }
  func.func @transform_1(%arg0: i32) -> (i32, i32) {
    %c0_i32 = arith.constant 0 : i32
    %c0_i32_0 = arith.constant 0 : i32
    %c0_i32_1 = arith.constant 0 : i32
    return %c0_i32, %c0_i32_0 : i32, i32
  }
  func.func @transform_2(%arg0: i32) -> (i32, i32) {
    %c0_i32 = arith.constant 0 : i32
    %c0_i32_0 = arith.constant 0 : i32
    %c0_i32_1 = arith.constant 0 : i32
    return %c0_i32, %c0_i32_0 : i32, i32
  }
  func.func @transform_3(%arg0: i32) -> (i32, i32) {
    %c0_i32 = arith.constant 0 : i32
    %c0_i32_0 = arith.constant 0 : i32
    %c0_i32_1 = arith.constant 0 : i32
    return %c0_i32, %c0_i32_0 : i32, i32
  }
  func.func @transform_4(%arg0: i32) -> (i32, i32) {
    %c0_i32 = arith.constant 0 : i32
    %c0_i32_0 = arith.constant 0 : i32
    %c0_i32_1 = arith.constant 0 : i32
    return %c0_i32, %c0_i32_0 : i32, i32
  }
  func.func @transform_5(%arg0: i32) -> (i32, i32) {
    %c0_i32 = arith.constant 0 : i32
    %c0_i32_0 = arith.constant 0 : i32
    %c0_i32_1 = arith.constant 0 : i32
    return %c0_i32, %c0_i32_0 : i32, i32
  }
  func.func @transform_6(%arg0: i32) -> (i32, i32) {
    %c0_i32 = arith.constant 0 : i32
    %c0_i32_0 = arith.constant 0 : i32
    %c0_i32_1 = arith.constant 0 : i32
    return %c0_i32, %c0_i32_0 : i32, i32
  }
  func.func @transform_7(%arg0: i32) -> (i32, i32) {
    %c0_i32 = arith.constant 0 : i32
    %c0_i32_0 = arith.constant 0 : i32
    %c0_i32_1 = arith.constant 0 : i32
    return %c0_i32, %c0_i32_0 : i32, i32
  }
  func.func @transform_8(%arg0: i32) -> (i32, i32) {
    %c0_i32 = arith.constant 0 : i32
    %c0_i32_0 = arith.constant 0 : i32
    %c0_i32_1 = arith.constant 0 : i32
    return %c0_i32, %c0_i32_0 : i32, i32
  }
  func.func @transform_9(%arg0: i32) -> (i32, i32) {
    %c0_i32 = arith.constant 0 : i32
    %c0_i32_0 = arith.constant 0 : i32
    %c0_i32_1 = arith.constant 0 : i32
    return %c0_i32, %c0_i32_0 : i32, i32
  }
  func.func @transform_10(%arg0: i32) -> (i32, i32) {
    %c0_i32 = arith.constant 0 : i32
    %c0_i32_0 = arith.constant 0 : i32
    return %arg0, %c0_i32 : i32, i32
  }
}

</mosaic_0001>

<llo_original>
// kernel: convnet_forward.1
$region0: #{convnet_forward.1}
  #allocation0 [shape = 'u32[]', space=smem, size = 0x4, offset = 0x4, fixed_abs, tag = 'smem constant byte address 0x4 - core index']
  #allocation1 [shape = 'u32[144,128]{1,0:T(1,128)}', space=vmem, size = 0x12000, scoped, tag = 'internal scratch']
  %s0 = inlined_call_operand.vmem [shape: bf16[2,1,900], index: 0, kind: input, shape index: {}]
  %s1 = inlined_call_operand.vmem [shape: f32[8,9], index: 1, kind: input, shape index: {}]
  %s2 = inlined_call_operand.vmem [shape: f32[8,1], index: 2, kind: input, shape index: {}]
  %s3 = inlined_call_operand.vmem [shape: bf16[16,72], index: 3, kind: input, shape index: {}]
  %s4 = inlined_call_operand.vmem [shape: f32[16,1], index: 4, kind: input, shape index: {}]
  %s5 = inlined_call_operand.hbm [shape: bf16[807,256], index: 5, kind: input, shape index: {}]
  %s6 = inlined_call_operand.vmem [shape: bf16[205,64], index: 6, kind: input, shape index: {}]
  %s7 = inlined_call_operand.vmem [shape: f32[16,64], index: 7, kind: input, shape index: {}]
  %s8 = inlined_call_operand.vmem [shape: f32[64,128], index: 8, kind: input, shape index: {}]
  %s9 = inlined_call_operand.vmem [shape: f32[1,128], index: 9, kind: input, shape index: {}]
  %s10 = inlined_call_operand.hbm [shape: f32[2,128], index: 10, kind: output, shape index: {}]
  %s11 = sld [smem:[#allocation0]]
  $region54: #{convnet_forward.1} parent=0
    _
  %s13 = ssub.s32 1, %s11
  %s14 = scalar_select 0, %s13, %s11
  $region1: #{convnet_forward.1} parent=0
    #allocation2 [shape = 'u8[413696]{0}', space=vmem, size = 0x65000, scoped, tag = 'input window, operand 5, single buffered']
    #allocation3 [shape = 's32[1]{0}', space=sflag, size = 0x4, scoped, tag = 'scoped memory for convnet_forward.1']
    #allocation4 [shape = 's32[1]{0}', space=sflag, size = 0x4, scoped, tag = 'scoped memory for convnet_forward.1']
    #allocation5 [shape = 'u8[1024]{0}', space=vmem, size = 0x400, scoped, tag = 'output window, operand 0, single buffered']
    %15 = vsyncpa [#allocation3], 0
    %16 = vsyncpa [#allocation4], 0
    // Predicated region
    $region2: #{convnet_forward.1} parent=1 // pred_check
      _
    $region3: #{convnet_forward.1} parent=1 // pred_check_branch
      %18 = sbr.rel (0) target = $region5
    $region4: #{convnet_forward.1} parent=1 // pred_region
      _
    $region5: #{convnet_forward.1} parent=1 // pred_fallthru
      _
    // Predicated region
    $region6: #{convnet_forward.1} parent=1 // pred_check
      _
    $region7: #{convnet_forward.1} parent=1 // pred_check_branch
      %20 = sbr.rel (0) target = $region9
    $region8: #{convnet_forward.1} parent=1 // pred_region
      _
    $region9: #{convnet_forward.1} parent=1 // pred_fallthru
      _
    // Predicated region
    $region10: #{convnet_forward.1} parent=1 // pred_check
      _
    $region11: #{convnet_forward.1} parent=1 // pred_check_branch
      %22 = sbr.rel (0) target = $region13
    $region12: #{convnet_forward.1} parent=1 // pred_region
      _
    $region13: #{convnet_forward.1} parent=1 // pred_fallthru
      _
    // Predicated region
    $region14: #{convnet_forward.1} parent=1 // pred_check
      _
    $region15: #{convnet_forward.1} parent=1 // pred_check_branch
      %24 = sbr.rel (0) target = $region17
    $region16: #{convnet_forward.1} parent=1 // pred_region
      _
    $region17: #{convnet_forward.1} parent=1 // pred_fallthru
      _
    // Predicated region
    $region18: #{convnet_forward.1} parent=1 // pred_check
      _
    $region19: #{convnet_forward.1} parent=1 // pred_check_branch
      %26 = sbr.rel (0) target = $region21
    $region20: #{convnet_forward.1} parent=1 // pred_region
      _
    $region21: #{convnet_forward.1} parent=1 // pred_fallthru
      _
    // Predicated region
    $region22: #{convnet_forward.1} parent=1 // pred_check
      _
    $region23: #{convnet_forward.1} parent=1 // pred_check_branch
      %28 = sbr.rel (0) target = $region25
    $region24: #{convnet_forward.1} parent=1 // pred_region
      %s30 = ssub.s32 12928, 12928
      %31 = vsyncadd [#allocation3], %s30
      %s32 = sshll.u32 [#allocation2], 4
      %s33 = int_to_ptr.vmem [resolvable:$true] %s32
      %38 = dma.hbm_to_vmem [thread:$0]  %s5, 12928, %s33, [#allocation3], 128, 128, 8
    $region25: #{convnet_forward.1} parent=1 // pred_fallthru
      _
    // Predicated region
    $region26: #{convnet_forward.1} parent=1 // pred_check
      _
    $region27: #{convnet_forward.1} parent=1 // pred_check_branch
      %40 = sbr.rel (0) target = $region29
    $region28: #{convnet_forward.1} parent=1 // pred_region
      _
    $region29: #{convnet_forward.1} parent=1 // pred_fallthru
      _
    // Predicated region
    $region30: #{convnet_forward.1} parent=1 // pred_check
      _
    $region31: #{convnet_forward.1} parent=1 // pred_check_branch
      %42 = sbr.rel (0) target = $region33
    $region32: #{convnet_forward.1} parent=1 // pred_region
      _
    $region33: #{convnet_forward.1} parent=1 // pred_fallthru
      _
    // Predicated region
    $region34: #{convnet_forward.1} parent=1 // pred_check
      _
    $region35: #{convnet_forward.1} parent=1 // pred_check_branch
      %44 = sbr.rel (0) target = $region37
    $region36: #{convnet_forward.1} parent=1 // pred_region
      _
    $region37: #{convnet_forward.1} parent=1 // pred_fallthru
      _
    // Predicated region
    $region38: #{convnet_forward.1} parent=1 // pred_check
      _
    $region39: #{convnet_forward.1} parent=1 // pred_check_branch
      %46 = sbr.rel (0) target = $region41
    $region40: #{convnet_forward.1} parent=1 // pred_region
      _
    $region41: #{convnet_forward.1} parent=1 // pred_fallthru
      _
    // Predicated region
    $region42: #{convnet_forward.1} parent=1 // pred_check
      _
    $region43: #{convnet_forward.1} parent=1 // pred_check_branch
      %48 = sbr.rel (0) target = $region45
    $region44: #{convnet_forward.1} parent=1 // pred_region
      %49 = dma.done [#allocation3], 12928
    $region45: #{convnet_forward.1} parent=1 // pred_fallthru
      _
    %v51 = vld [vmem:[%s0] sm:$0xff]
    %v52 = vunpack.c.l.bf16 %v51
    %v53 = vunpack.c.h.bf16 %v51
    %v54 = vld [vmem:[%s2] sm:$0xff]
    %56 = vset.pattern.permute.xlu0 0
    %57 = vperm.xlu0 %56, %v54
    %v58 = vpop.permute.xlu0 %57
    %v60 = vld [vmem:[%s1] sm:$0xff]
    %v63 = vlaneseq
    %v64 = vshrl.u32 %v63, 7
    %v65 = vsub.s32 0, %v64
    %v66 = vrot.slane %v52, %v65
    %v67 = vlaneseq
    %v68 = vshrl.u32 %v67, 7
    %v69 = vsub.s32 2, %v68
    %v70 = vrot.slane %v52, %v69
    %v71 = vlaneseq
    %v72 = vshrl.u32 %v71, 7
    %v73 = vsub.s32 4, %v72
    %v74 = vrot.slane %v52, %v73
    %v75 = vlaneseq
    %v76 = vshrl.u32 %v75, 7
    %v77 = vsub.s32 6, %v76
    %v78 = vrot.slane %v52, %v77
    %v79 = vlaneseq
    %v80 = vshrl.u32 %v79, 7
    %v81 = vsub.s32 0, %v80
    %v82 = vrot.slane %v53, %v81
    %v83 = vlaneseq
    %v84 = vshrl.u32 %v83, 7
    %v85 = vsub.s32 2, %v84
    %v86 = vrot.slane %v53, %v85
    %v87 = vlaneseq
    %v88 = vshrl.u32 %v87, 7
    %v89 = vsub.s32 4, %v88
    %v90 = vrot.slane %v53, %v89
    %v98 = vlaneseq
    %v99 = vshrl.u32 %v98, 7
    %v100 = vsub.s32 0, %v99
    %v101 = vrot.slane %v66, %v100
    %v102 = vlaneseq
    %v103 = vshrl.u32 %v102, 7
    %v104 = vsub.s32 0, %v103
    %v105 = vrot.slane %v70, %v104
    %v106 = vlaneseq
    %v107 = vshrl.u32 %v106, 7
    %v108 = vsub.s32 0, %v107
    %v109 = vrot.slane %v74, %v108
    %v110 = vlaneseq
    %v111 = vshrl.u32 %v110, 7
    %v112 = vsub.s32 0, %v111
    %v113 = vrot.slane %v78, %v112
    %v114 = vlaneseq
    %v115 = vshrl.u32 %v114, 7
    %v116 = vsub.s32 0, %v115
    %v117 = vrot.slane %v82, %v116
    %v118 = vlaneseq
    %v119 = vshrl.u32 %v118, 7
    %v120 = vsub.s32 0, %v119
    %v121 = vrot.slane %v86, %v120
    %v122 = vlaneseq
    %v123 = vshrl.u32 %v122, 7
    %v124 = vsub.s32 0, %v123
    %v125 = vrot.slane %v90, %v124
    %127 = vset.pattern.permute.xlu0 0
    %128 = vperm.xlu0 %127, %v60
    %v129 = vpop.permute.xlu0 %128
    %v131 = vmul.f32 %v129, %v101
    %v132 = vmul.f32 %v129, %v105
    %v133 = vmul.f32 %v129, %v109
    %v134 = vmul.f32 %v129, %v113
    %v135 = vmul.f32 %v129, %v117
    %v136 = vmul.f32 %v129, %v121
    %v137 = vmul.f32 %v129, %v125
    %v138 = vadd.f32 %v58, %v131
    %v139 = vadd.f32 %v58, %v132
    %v140 = vadd.f32 %v58, %v133
    %v141 = vadd.f32 %v58, %v134
    %v142 = vadd.f32 %v58, %v135
    %v143 = vadd.f32 %v58, %v136
    %v144 = vadd.f32 %v58, %v137
    %145 = vset.pattern.permute.xlu0 1
    %146 = vperm.xlu0 %145, %v60
    %v147 = vpop.permute.xlu0 %146
    %v149 = vmul.f32 %v147, %v101
    %v150 = vmul.f32 %v147, %v105
    %v151 = vmul.f32 %v147, %v109
    %v152 = vmul.f32 %v147, %v113
    %v153 = vmul.f32 %v147, %v117
    %v154 = vmul.f32 %v147, %v121
    %v155 = vmul.f32 %v147, %v125
    %163 = vrot.lane.b32.xlu0 %v149, 127
    %v164 = vpop.permute.xlu0 %163
    %165 = vrot.lane.b32.xlu0 %v150, 127
    %v166 = vpop.permute.xlu0 %165
    %167 = vrot.lane.b32.xlu0 %v151, 127
    %v168 = vpop.permute.xlu0 %167
    %169 = vrot.lane.b32.xlu0 %v152, 127
    %v170 = vpop.permute.xlu0 %169
    %171 = vrot.lane.b32.xlu0 %v153, 127
    %v172 = vpop.permute.xlu0 %171
    %173 = vrot.lane.b32.xlu0 %v154, 127
    %v174 = vpop.permute.xlu0 %173
    %175 = vrot.lane.b32.xlu0 %v155, 127
    %v176 = vpop.permute.xlu0 %175
    %vm177 = vcmask 1039360
    %v178 = vsel %vm177, %v164, %v166
    %v179 = vsel %vm177, %v166, %v168
    %v180 = vsel %vm177, %v168, %v170
    %v181 = vsel %vm177, %v170, %v172
    %v182 = vsel %vm177, %v172, %v174
    %v183 = vsel %vm177, %v174, %v176
    %v191 = vadd.f32 %v138, %v178
    %v192 = vadd.f32 %v139, %v179
    %v193 = vadd.f32 %v140, %v180
    %v194 = vadd.f32 %v141, %v181
    %v195 = vadd.f32 %v142, %v182
    %v196 = vadd.f32 %v143, %v183
    %v197 = vadd.f32 %v144, %v176
    %198 = vset.pattern.permute.xlu0 2
    %199 = vperm.xlu0 %198, %v60
    %v200 = vpop.permute.xlu0 %199
    %v202 = vmul.f32 %v200, %v101
    %v203 = vmul.f32 %v200, %v105
    %v204 = vmul.f32 %v200, %v109
    %v205 = vmul.f32 %v200, %v113
    %v206 = vmul.f32 %v200, %v117
    %v207 = vmul.f32 %v200, %v121
    %v208 = vmul.f32 %v200, %v125
    %216 = vrot.lane.b32.xlu0 %v202, 126
    %v217 = vpop.permute.xlu0 %216
    %218 = vrot.lane.b32.xlu0 %v203, 126
    %v219 = vpop.permute.xlu0 %218
    %220 = vrot.lane.b32.xlu0 %v204, 126
    %v221 = vpop.permute.xlu0 %220
    %222 = vrot.lane.b32.xlu0 %v205, 126
    %v223 = vpop.permute.xlu0 %222
    %224 = vrot.lane.b32.xlu0 %v206, 126
    %v225 = vpop.permute.xlu0 %224
    %226 = vrot.lane.b32.xlu0 %v207, 126
    %v227 = vpop.permute.xlu0 %226
    %228 = vrot.lane.b32.xlu0 %v208, 126
    %v229 = vpop.permute.xlu0 %228
    %vm230 = vcmask 1031168
    %v231 = vsel %vm230, %v217, %v219
    %v232 = vsel %vm230, %v219, %v221
    %v233 = vsel %vm230, %v221, %v223
    %v234 = vsel %vm230, %v223, %v225
    %v235 = vsel %vm230, %v225, %v227
    %v236 = vsel %vm230, %v227, %v229
    %v244 = vadd.f32 %v191, %v231
    %v245 = vadd.f32 %v192, %v232
    %v246 = vadd.f32 %v193, %v233
    %v247 = vadd.f32 %v194, %v234
    %v248 = vadd.f32 %v195, %v235
    %v249 = vadd.f32 %v196, %v236
    %v250 = vadd.f32 %v197, %v229
    %251 = vset.pattern.permute.xlu0 3
    %252 = vperm.xlu0 %251, %v60
    %v253 = vpop.permute.xlu0 %252
    %v255 = vmul.f32 %v253, %v101
    %v256 = vmul.f32 %v253, %v105
    %v257 = vmul.f32 %v253, %v109
    %v258 = vmul.f32 %v253, %v113
    %v259 = vmul.f32 %v253, %v117
    %v260 = vmul.f32 %v253, %v121
    %v261 = vmul.f32 %v253, %v125
    %269 = vrot.lane.b32.xlu0 %v255, 98
    %v270 = vpop.permute.xlu0 %269
    %271 = vrot.lane.b32.xlu0 %v256, 98
    %v272 = vpop.permute.xlu0 %271
    %273 = vrot.lane.b32.xlu0 %v257, 98
    %v274 = vpop.permute.xlu0 %273
    %275 = vrot.lane.b32.xlu0 %v258, 98
    %v276 = vpop.permute.xlu0 %275
    %277 = vrot.lane.b32.xlu0 %v259, 98
    %v278 = vpop.permute.xlu0 %277
    %279 = vrot.lane.b32.xlu0 %v260, 98
    %v280 = vpop.permute.xlu0 %279
    %281 = vrot.lane.b32.xlu0 %v261, 98
    %v282 = vpop.permute.xlu0 %281
    %vm283 = vcmask 801792
    %v284 = vsel %vm283, %v270, %v272
    %v285 = vsel %vm283, %v272, %v274
    %v286 = vsel %vm283, %v274, %v276
    %v287 = vsel %vm283, %v276, %v278
    %v288 = vsel %vm283, %v278, %v280
    %v289 = vsel %vm283, %v280, %v282
    %v297 = vadd.f32 %v244, %v284
    %v298 = vadd.f32 %v245, %v285
    %v299 = vadd.f32 %v246, %v286
    %v300 = vadd.f32 %v247, %v287
    %v301 = vadd.f32 %v248, %v288
    %v302 = vadd.f32 %v249, %v289
    %v303 = vadd.f32 %v250, %v282
    %304 = vset.pattern.permute.xlu0 4
    %305 = vperm.xlu0 %304, %v60
    %v306 = vpop.permute.xlu0 %305
    %v308 = vmul.f32 %v306, %v101
    %v309 = vmul.f32 %v306, %v105
    %v310 = vmul.f32 %v306, %v109
    %v311 = vmul.f32 %v306, %v113
    %v312 = vmul.f32 %v306, %v117
    %v313 = vmul.f32 %v306, %v121
    %v314 = vmul.f32 %v306, %v125
    %322 = vrot.lane.b32.xlu0 %v308, 97
    %v323 = vpop.permute.xlu0 %322
    %324 = vrot.lane.b32.xlu0 %v309, 97
    %v325 = vpop.permute.xlu0 %324
    %326 = vrot.lane.b32.xlu0 %v310, 97
    %v327 = vpop.permute.xlu0 %326
    %328 = vrot.lane.b32.xlu0 %v311, 97
    %v329 = vpop.permute.xlu0 %328
    %330 = vrot.lane.b32.xlu0 %v312, 97
    %v331 = vpop.permute.xlu0 %330
    %332 = vrot.lane.b32.xlu0 %v313, 97
    %v333 = vpop.permute.xlu0 %332
    %334 = vrot.lane.b32.xlu0 %v314, 97
    %v335 = vpop.permute.xlu0 %334
    %vm336 = vcmask 793600
    %v337 = vsel %vm336, %v323, %v325
    %v338 = vsel %vm336, %v325, %v327
    %v339 = vsel %vm336, %v327, %v329
    %v340 = vsel %vm336, %v329, %v331
    %v341 = vsel %vm336, %v331, %v333
    %v342 = vsel %vm336, %v333, %v335
    %v350 = vadd.f32 %v297, %v337
    %v351 = vadd.f32 %v298, %v338
    %v352 = vadd.f32 %v299, %v339
    %v353 = vadd.f32 %v300, %v340
    %v354 = vadd.f32 %v301, %v341
    %v355 = vadd.f32 %v302, %v342
    %v356 = vadd.f32 %v303, %v335
    %357 = vset.pattern.permute.xlu0 5
    %358 = vperm.xlu0 %357, %v60
    %v359 = vpop.permute.xlu0 %358
    %v361 = vmul.f32 %v359, %v101
    %v362 = vmul.f32 %v359, %v105
    %v363 = vmul.f32 %v359, %v109
    %v364 = vmul.f32 %v359, %v113
    %v365 = vmul.f32 %v359, %v117
    %v366 = vmul.f32 %v359, %v121
    %v367 = vmul.f32 %v359, %v125
    %375 = vrot.lane.b32.xlu0 %v361, 96
    %v376 = vpop.permute.xlu0 %375
    %377 = vrot.lane.b32.xlu0 %v362, 96
    %v378 = vpop.permute.xlu0 %377
    %379 = vrot.lane.b32.xlu0 %v363, 96
    %v380 = vpop.permute.xlu0 %379
    %381 = vrot.lane.b32.xlu0 %v364, 96
    %v382 = vpop.permute.xlu0 %381
    %383 = vrot.lane.b32.xlu0 %v365, 96
    %v384 = vpop.permute.xlu0 %383
    %385 = vrot.lane.b32.xlu0 %v366, 96
    %v386 = vpop.permute.xlu0 %385
    %387 = vrot.lane.b32.xlu0 %v367, 96
    %v388 = vpop.permute.xlu0 %387
    %vm389 = vcmask 785408
    %v390 = vsel %vm389, %v376, %v378
    %v391 = vsel %vm389, %v378, %v380
    %v392 = vsel %vm389, %v380, %v382
    %v393 = vsel %vm389, %v382, %v384
    %v394 = vsel %vm389, %v384, %v386
    %v395 = vsel %vm389, %v386, %v388
    %v403 = vadd.f32 %v350, %v390
    %v404 = vadd.f32 %v351, %v391
    %v405 = vadd.f32 %v352, %v392
    %v406 = vadd.f32 %v353, %v393
    %v407 = vadd.f32 %v354, %v394
    %v408 = vadd.f32 %v355, %v395
    %v409 = vadd.f32 %v356, %v388
    %v410 = vlaneseq
    %v411 = vshrl.u32 %v410, 7
    %v412 = vsub.s32 6, %v411
    %v413 = vrot.slane %v53, %v412
    %v415 = vlaneseq
    %v416 = vshrl.u32 %v415, 7
    %v417 = vsub.s32 0, %v416
    %v418 = vrot.slane %v413, %v417
    %419 = vset.pattern.permute.xlu0 6
    %420 = vperm.xlu0 %419, %v60
    %v421 = vpop.permute.xlu0 %420
    %v423 = vmul.f32 %v421, %v101
    %v424 = vmul.f32 %v421, %v105
    %v425 = vmul.f32 %v421, %v109
    %v426 = vmul.f32 %v421, %v113
    %v427 = vmul.f32 %v421, %v117
    %v428 = vmul.f32 %v421, %v121
    %v429 = vmul.f32 %v421, %v125
    %v430 = vmul.f32 %v421, %v418
    %439 = vrot.lane.b32.xlu0 %v423, 68
    %v440 = vpop.permute.xlu0 %439
    %441 = vrot.lane.b32.xlu0 %v424, 68
    %v442 = vpop.permute.xlu0 %441
    %443 = vrot.lane.b32.xlu0 %v425, 68
    %v444 = vpop.permute.xlu0 %443
    %445 = vrot.lane.b32.xlu0 %v426, 68
    %v446 = vpop.permute.xlu0 %445
    %447 = vrot.lane.b32.xlu0 %v427, 68
    %v448 = vpop.permute.xlu0 %447
    %449 = vrot.lane.b32.xlu0 %v428, 68
    %v450 = vpop.permute.xlu0 %449
    %451 = vrot.lane.b32.xlu0 %v429, 68
    %v452 = vpop.permute.xlu0 %451
    %453 = vrot.lane.b32.xlu0 %v430, 68
    %v454 = vpop.permute.xlu0 %453
    %vm455 = vcmask 556032
    %v456 = vsel %vm455, %v440, %v442
    %v457 = vsel %vm455, %v442, %v444
    %v458 = vsel %vm455, %v444, %v446
    %v459 = vsel %vm455, %v446, %v448
    %v460 = vsel %vm455, %v448, %v450
    %v461 = vsel %vm455, %v450, %v452
    %v462 = vsel %vm455, %v452, %v454
    %v470 = vadd.f32 %v403, %v456
    %v471 = vadd.f32 %v404, %v457
    %v472 = vadd.f32 %v405, %v458
    %v473 = vadd.f32 %v406, %v459
    %v474 = vadd.f32 %v407, %v460
    %v475 = vadd.f32 %v408, %v461
    %v476 = vadd.f32 %v409, %v462
    %477 = vset.pattern.permute.xlu0 7
    %478 = vperm.xlu0 %477, %v60
    %v479 = vpop.permute.xlu0 %478
    %v481 = vmul.f32 %v479, %v101
    %v482 = vmul.f32 %v479, %v105
    %v483 = vmul.f32 %v479, %v109
    %v484 = vmul.f32 %v479, %v113
    %v485 = vmul.f32 %v479, %v117
    %v486 = vmul.f32 %v479, %v121
    %v487 = vmul.f32 %v479, %v125
    %v488 = vmul.f32 %v479, %v418
    %497 = vrot.lane.b32.xlu0 %v481, 67
    %v498 = vpop.permute.xlu0 %497
    %499 = vrot.lane.b32.xlu0 %v482, 67
    %v500 = vpop.permute.xlu0 %499
    %501 = vrot.lane.b32.xlu0 %v483, 67
    %v502 = vpop.permute.xlu0 %501
    %503 = vrot.lane.b32.xlu0 %v484, 67
    %v504 = vpop.permute.xlu0 %503
    %505 = vrot.lane.b32.xlu0 %v485, 67
    %v506 = vpop.permute.xlu0 %505
    %507 = vrot.lane.b32.xlu0 %v486, 67
    %v508 = vpop.permute.xlu0 %507
    %509 = vrot.lane.b32.xlu0 %v487, 67
    %v510 = vpop.permute.xlu0 %509
    %511 = vrot.lane.b32.xlu0 %v488, 67
    %v512 = vpop.permute.xlu0 %511
    %vm513 = vcmask 547840
    %v514 = vsel %vm513, %v498, %v500
    %v515 = vsel %vm513, %v500, %v502
    %v516 = vsel %vm513, %v502, %v504
    %v517 = vsel %vm513, %v504, %v506
    %v518 = vsel %vm513, %v506, %v508
    %v519 = vsel %vm513, %v508, %v510
    %v520 = vsel %vm513, %v510, %v512
    %v528 = vadd.f32 %v470, %v514
    %v529 = vadd.f32 %v471, %v515
    %v530 = vadd.f32 %v472, %v516
    %v531 = vadd.f32 %v473, %v517
    %v532 = vadd.f32 %v474, %v518
    %v533 = vadd.f32 %v475, %v519
    %v534 = vadd.f32 %v476, %v520
    %535 = vset.pattern.permute.xlu0 8
    %536 = vperm.xlu0 %535, %v60
    %v537 = vpop.permute.xlu0 %536
    %v539 = vmul.f32 %v537, %v101
    %v540 = vmul.f32 %v537, %v105
    %v541 = vmul.f32 %v537, %v109
    %v542 = vmul.f32 %v537, %v113
    %v543 = vmul.f32 %v537, %v117
    %v544 = vmul.f32 %v537, %v121
    %v545 = vmul.f32 %v537, %v125
    %v546 = vmul.f32 %v537, %v418
    %555 = vrot.lane.b32.xlu0 %v539, 66
    %v556 = vpop.permute.xlu0 %555
    %557 = vrot.lane.b32.xlu0 %v540, 66
    %v558 = vpop.permute.xlu0 %557
    %559 = vrot.lane.b32.xlu0 %v541, 66
    %v560 = vpop.permute.xlu0 %559
    %561 = vrot.lane.b32.xlu0 %v542, 66
    %v562 = vpop.permute.xlu0 %561
    %563 = vrot.lane.b32.xlu0 %v543, 66
    %v564 = vpop.permute.xlu0 %563
    %565 = vrot.lane.b32.xlu0 %v544, 66
    %v566 = vpop.permute.xlu0 %565
    %567 = vrot.lane.b32.xlu0 %v545, 66
    %v568 = vpop.permute.xlu0 %567
    %569 = vrot.lane.b32.xlu0 %v546, 66
    %v570 = vpop.permute.xlu0 %569
    %vm571 = vcmask 539648
    %v572 = vsel %vm571, %v556, %v558
    %v573 = vsel %vm571, %v558, %v560
    %v574 = vsel %vm571, %v560, %v562
    %v575 = vsel %vm571, %v562, %v564
    %v576 = vsel %vm571, %v564, %v566
    %v577 = vsel %vm571, %v566, %v568
    %v578 = vsel %vm571, %v568, %v570
    %v586 = vadd.f32 %v528, %v572
    %v587 = vadd.f32 %v529, %v573
    %v588 = vadd.f32 %v530, %v574
    %v589 = vadd.f32 %v531, %v575
    %v590 = vadd.f32 %v532, %v576
    %v591 = vadd.f32 %v533, %v577
    %v592 = vadd.f32 %v534, %v578
    %v593 = vmax.f32 %v586, 0.0
    %v594 = vmax.f32 %v587, 0.0
    %v595 = vmax.f32 %v588, 0.0
    %v596 = vmax.f32 %v589, 0.0
    %v597 = vmax.f32 %v590, 0.0
    %v598 = vmax.f32 %v591, 0.0
    %v599 = vmax.f32 %v592, 0.0
    %607 = vrot.lane.b32.xlu0 %v593, 127
    %v608 = vpop.permute.xlu0 %607
    %609 = vrot.lane.b32.xlu0 %v594, 127
    %v610 = vpop.permute.xlu0 %609
    %611 = vrot.lane.b32.xlu0 %v595, 127
    %v612 = vpop.permute.xlu0 %611
    %613 = vrot.lane.b32.xlu0 %v596, 127
    %v614 = vpop.permute.xlu0 %613
    %615 = vrot.lane.b32.xlu0 %v597, 127
    %v616 = vpop.permute.xlu0 %615
    %617 = vrot.lane.b32.xlu0 %v598, 127
    %v618 = vpop.permute.xlu0 %617
    %619 = vrot.lane.b32.xlu0 %v599, 127
    %v620 = vpop.permute.xlu0 %619
    %v621 = vsel %vm177, %v608, %v610
    %v622 = vsel %vm177, %v610, %v612
    %v623 = vsel %vm177, %v612, %v614
    %v624 = vsel %vm177, %v614, %v616
    %v625 = vsel %vm177, %v616, %v618
    %v626 = vsel %vm177, %v618, %v620
    %v634 = vmax.f32 %v593, %v621
    %v635 = vmax.f32 %v594, %v622
    %v636 = vmax.f32 %v595, %v623
    %v637 = vmax.f32 %v596, %v624
    %v638 = vmax.f32 %v597, %v625
    %v639 = vmax.f32 %v598, %v626
    %v640 = vmax.f32 %v599, %v620
    %648 = vrot.lane.b32.xlu0 %v634, 98
    %v649 = vpop.permute.xlu0 %648
    %650 = vrot.lane.b32.xlu0 %v635, 98
    %v651 = vpop.permute.xlu0 %650
    %652 = vrot.lane.b32.xlu0 %v636, 98
    %v653 = vpop.permute.xlu0 %652
    %654 = vrot.lane.b32.xlu0 %v637, 98
    %v655 = vpop.permute.xlu0 %654
    %656 = vrot.lane.b32.xlu0 %v638, 98
    %v657 = vpop.permute.xlu0 %656
    %658 = vrot.lane.b32.xlu0 %v639, 98
    %v659 = vpop.permute.xlu0 %658
    %660 = vrot.lane.b32.xlu0 %v640, 98
    %v661 = vpop.permute.xlu0 %660
    %v662 = vsel %vm283, %v649, %v651
    %v663 = vsel %vm283, %v651, %v653
    %v664 = vsel %vm283, %v653, %v655
    %v665 = vsel %vm283, %v655, %v657
    %v666 = vsel %vm283, %v657, %v659
    %v667 = vsel %vm283, %v659, %v661
    %v675 = vmax.f32 %v634, %v662
    %v676 = vmax.f32 %v635, %v663
    %v677 = vmax.f32 %v636, %v664
    %v678 = vmax.f32 %v637, %v665
    %v679 = vmax.f32 %v638, %v666
    %v680 = vmax.f32 %v639, %v667
    %v681 = vmax.f32 %v640, %v661
    %v682 = vpack.c.bf16 %v675, %v675
    %v683 = vpack.c.bf16 %v676, %v676
    %v684 = vpack.c.bf16 %v677, %v677
    %v685 = vpack.c.bf16 %v678, %v678
    %v686 = vpack.c.bf16 %v679, %v679
    %v687 = vpack.c.bf16 %v680, %v680
    %v688 = vpack.c.bf16 %v681, %v681
    %v689 = vld [vmem:[#allocation2] sm:$0xff]
    %v690 = vld [vmem:[#allocation2 + $0x8] sm:$0xff]
    %v691 = vld [vmem:[#allocation2 + $0x10] sm:$0xff]
    %v692 = vld [vmem:[#allocation2 + $0x18] sm:$0xff]
    %v693 = vld [vmem:[#allocation2 + $0x20] sm:$0xff]
    %v694 = vld [vmem:[#allocation2 + $0x28] sm:$0xff]
    %v695 = vld [vmem:[#allocation2 + $0x30] sm:$0xff]
    %v696 = vld [vmem:[#allocation2 + $0x38] sm:$0xff]
    %v697 = vld [vmem:[#allocation2 + $0x40] sm:$0xff]
    %v698 = vld [vmem:[#allocation2 + $0x48] sm:$0xff]
    %v699 = vld [vmem:[#allocation2 + $0x50] sm:$0xff]
    %v700 = vld [vmem:[#allocation2 + $0x58] sm:$0xff]
    %v701 = vld [vmem:[#allocation2 + $0x60] sm:$0xff]
    %v702 = vld [vmem:[#allocation2 + $0x68] sm:$0xff]
    %v703 = vld [vmem:[#allocation2 + $0x70] sm:$0xff]
    %v704 = vld [vmem:[#allocation2 + $0x78] sm:$0xff]
    %v705 = vld [vmem:[#allocation2 + $0x80] sm:$0xff]
    %v706 = vld [vmem:[#allocation2 + $0x88] sm:$0xff]
    %v707 = vld [vmem:[#allocation2 + $0x90] sm:$0xff]
    %v708 = vld [vmem:[#allocation2 + $0x98] sm:$0xff]
    %v709 = vld [vmem:[#allocation2 + $0xa0] sm:$0xff]
    %v710 = vld [vmem:[#allocation2 + $0xa8] sm:$0xff]
    %v711 = vld [vmem:[#allocation2 + $0xb0] sm:$0xff]
    %v712 = vld [vmem:[#allocation2 + $0xb8] sm:$0xff]
    %v713 = vld [vmem:[#allocation2 + $0xc0] sm:$0xff]
    %v714 = vld [vmem:[#allocation2 + $0xc8] sm:$0xff]
    %v715 = vld [vmem:[#allocation2 + $0xd0] sm:$0xff]
    %v716 = vld [vmem:[#allocation2 + $0xd8] sm:$0xff]
    %v717 = vld [vmem:[#allocation2 + $0xe0] sm:$0xff]
    %v718 = vld [vmem:[#allocation2 + $0xe8] sm:$0xff]
    %v719 = vld [vmem:[#allocation2 + $0xf0] sm:$0xff]
    %v720 = vld [vmem:[#allocation2 + $0xf8] sm:$0xff]
    %v721 = vld [vmem:[#allocation2 + $0x100] sm:$0xff]
    %v722 = vld [vmem:[#allocation2 + $0x108] sm:$0xff]
    %v723 = vld [vmem:[#allocation2 + $0x110] sm:$0xff]
    %v724 = vld [vmem:[#allocation2 + $0x118] sm:$0xff]
    %v725 = vld [vmem:[#allocation2 + $0x120] sm:$0xff]
    %v726 = vld [vmem:[#allocation2 + $0x128] sm:$0xff]
    %v727 = vld [vmem:[#allocation2 + $0x130] sm:$0xff]
    %v728 = vld [vmem:[#allocation2 + $0x138] sm:$0xff]
    %v729 = vld [vmem:[#allocation2 + $0x140] sm:$0xff]
    %v730 = vld [vmem:[#allocation2 + $0x148] sm:$0xff]
    %v731 = vld [vmem:[#allocation2 + $0x150] sm:$0xff]
    %v732 = vld [vmem:[#allocation2 + $0x158] sm:$0xff]
    %v733 = vld [vmem:[#allocation2 + $0x160] sm:$0xff]
    %v734 = vld [vmem:[#allocation2 + $0x168] sm:$0xff]
    %v735 = vld [vmem:[#allocation2 + $0x170] sm:$0xff]
    %v736 = vld [vmem:[#allocation2 + $0x178] sm:$0xff]
    %v737 = vld [vmem:[#allocation2 + $0x180] sm:$0xff]
    %v738 = vld [vmem:[#allocation2 + $0x188] sm:$0xff]
    %v739 = vld [vmem:[#allocation2 + $0x190] sm:$0xff]
    %v740 = vld [vmem:[#allocation2 + $0x198] sm:$0xff]
    %v741 = vld [vmem:[#allocation2 + $0x1a0] sm:$0xff]
    %v742 = vld [vmem:[#allocation2 + $0x1a8] sm:$0xff]
    %v743 = vld [vmem:[#allocation2 + $0x1b0] sm:$0xff]
    %v744 = vld [vmem:[#allocation2 + $0x1b8] sm:$0xff]
    %v745 = vld [vmem:[#allocation2 + $0x1c0] sm:$0xff]
    %v746 = vld [vmem:[#allocation2 + $0x1c8] sm:$0xff]
    %v747 = vld [vmem:[#allocation2 + $0x1d0] sm:$0xff]
    %v748 = vld [vmem:[#allocation2 + $0x1d8] sm:$0xff]
    %v749 = vld [vmem:[#allocation2 + $0x1e0] sm:$0xff]
    %v750 = vld [vmem:[#allocation2 + $0x1e8] sm:$0xff]
    %v751 = vld [vmem:[#allocation2 + $0x1f0] sm:$0xff]
    %v752 = vld [vmem:[#allocation2 + $0x1f8] sm:$0xff]
    %v753 = vld [vmem:[#allocation2 + $0x200] sm:$0xff]
    %v754 = vld [vmem:[#allocation2 + $0x208] sm:$0xff]
    %v755 = vld [vmem:[#allocation2 + $0x210] sm:$0xff]
    %v756 = vld [vmem:[#allocation2 + $0x218] sm:$0xff]
    %v757 = vld [vmem:[#allocation2 + $0x220] sm:$0xff]
    %v758 = vld [vmem:[#allocation2 + $0x228] sm:$0xff]
    %v759 = vld [vmem:[#allocation2 + $0x230] sm:$0xff]
    %v760 = vld [vmem:[#allocation2 + $0x238] sm:$0xff]
    %v761 = vld [vmem:[#allocation2 + $0x240] sm:$0xff]
    %v762 = vld [vmem:[#allocation2 + $0x248] sm:$0xff]
    %v763 = vld [vmem:[#allocation2 + $0x250] sm:$0xff]
    %v764 = vld [vmem:[#allocation2 + $0x258] sm:$0xff]
    %v765 = vld [vmem:[#allocation2 + $0x260] sm:$0xff]
    %v766 = vld [vmem:[#allocation2 + $0x268] sm:$0xff]
    %v767 = vld [vmem:[#allocation2 + $0x270] sm:$0xff]
    %v768 = vld [vmem:[#allocation2 + $0x278] sm:$0xff]
    %v769 = vld [vmem:[#allocation2 + $0x280] sm:$0xff]
    %v770 = vld [vmem:[#allocation2 + $0x288] sm:$0xff]
    %v771 = vld [vmem:[#allocation2 + $0x290] sm:$0xff]
    %v772 = vld [vmem:[#allocation2 + $0x298] sm:$0xff]
    %v773 = vld [vmem:[#allocation2 + $0x2a0] sm:$0xff]
    %v774 = vld [vmem:[#allocation2 + $0x2a8] sm:$0xff]
    %v775 = vld [vmem:[#allocation2 + $0x2b0] sm:$0xff]
    %v776 = vld [vmem:[#allocation2 + $0x2b8] sm:$0xff]
    %v777 = vld [vmem:[#allocation2 + $0x2c0] sm:$0xff]
    %v778 = vld [vmem:[#allocation2 + $0x2c8] sm:$0xff]
    %v779 = vld [vmem:[#allocation2 + $0x2d0] sm:$0xff]
    %v780 = vld [vmem:[#allocation2 + $0x2d8] sm:$0xff]
    %v781 = vld [vmem:[#allocation2 + $0x2e0] sm:$0xff]
    %v782 = vld [vmem:[#allocation2 + $0x2e8] sm:$0xff]
    %v783 = vld [vmem:[#allocation2 + $0x2f0] sm:$0xff]
    %v784 = vld [vmem:[#allocation2 + $0x2f8] sm:$0xff]
    %v785 = vld [vmem:[#allocation2 + $0x300] sm:$0xff]
    %v786 = vld [vmem:[#allocation2 + $0x308] sm:$0xff]
    %v787 = vld [vmem:[#allocation2 + $0x310] sm:$0xff]
    %v788 = vld [vmem:[#allocation2 + $0x318] sm:$0xff]
    %v789 = vld [vmem:[#allocation2 + $0x320] sm:$0xff]
    %v891 = vunpack.c.l.b16 %v689
    %v892 = vunpack.c.h.b16 %v689
    %v893 = vunpack.c.l.b16 %v690
    %v894 = vunpack.c.h.b16 %v690
    %v895 = vunpack.c.l.b16 %v691
    %v896 = vunpack.c.h.b16 %v691
    %v897 = vunpack.c.l.b16 %v692
    %v898 = vunpack.c.h.b16 %v692
    %v899 = vunpack.c.l.b16 %v693
    %v900 = vunpack.c.h.b16 %v693
    %v901 = vunpack.c.l.b16 %v694
    %v902 = vunpack.c.h.b16 %v694
    %v903 = vunpack.c.l.b16 %v695
    %v904 = vunpack.c.h.b16 %v695
    %v905 = vunpack.c.l.b16 %v696
    %v906 = vunpack.c.h.b16 %v696
    %v907 = vunpack.c.l.b16 %v697
    %v908 = vunpack.c.h.b16 %v697
    %v909 = vunpack.c.l.b16 %v698
    %v910 = vunpack.c.h.b16 %v698
    %v911 = vunpack.c.l.b16 %v699
    %v912 = vunpack.c.h.b16 %v699
    %v913 = vunpack.c.l.b16 %v700
    %v914 = vunpack.c.h.b16 %v700
    %v915 = vunpack.c.l.b16 %v701
    %v916 = vunpack.c.h.b16 %v701
    %v917 = vunpack.c.l.b16 %v702
    %v918 = vunpack.c.h.b16 %v702
    %v919 = vunpack.c.l.b16 %v703
    %v920 = vunpack.c.h.b16 %v703
    %v921 = vunpack.c.l.b16 %v704
    %v922 = vunpack.c.h.b16 %v704
    %v923 = vunpack.c.l.b16 %v705
    %v924 = vunpack.c.h.b16 %v705
    %v925 = vunpack.c.l.b16 %v706
    %v926 = vunpack.c.h.b16 %v706
    %v927 = vunpack.c.l.b16 %v707
    %v928 = vunpack.c.h.b16 %v707
    %v929 = vunpack.c.l.b16 %v708
    %v930 = vunpack.c.h.b16 %v708
    %v931 = vunpack.c.l.b16 %v709
    %v932 = vunpack.c.h.b16 %v709
    %v933 = vunpack.c.l.b16 %v710
    %v934 = vunpack.c.h.b16 %v710
    %v935 = vunpack.c.l.b16 %v711
    %v936 = vunpack.c.h.b16 %v711
    %v937 = vunpack.c.l.b16 %v712
    %v938 = vunpack.c.h.b16 %v712
    %v939 = vunpack.c.l.b16 %v713
    %v940 = vunpack.c.h.b16 %v713
    %v941 = vunpack.c.l.b16 %v714
    %v942 = vunpack.c.h.b16 %v714
    %v943 = vunpack.c.l.b16 %v715
    %v944 = vunpack.c.h.b16 %v715
    %v945 = vunpack.c.l.b16 %v716
    %v946 = vunpack.c.h.b16 %v716
    %v947 = vunpack.c.l.b16 %v717
    %v948 = vunpack.c.h.b16 %v717
    %v949 = vunpack.c.l.b16 %v718
    %v950 = vunpack.c.h.b16 %v718
    %v951 = vunpack.c.l.b16 %v719
    %v952 = vunpack.c.h.b16 %v719
    %v953 = vunpack.c.l.b16 %v720
    %v954 = vunpack.c.h.b16 %v720
    %v955 = vunpack.c.l.b16 %v721
    %v956 = vunpack.c.h.b16 %v721
    %v957 = vunpack.c.l.b16 %v722
    %v958 = vunpack.c.h.b16 %v722
    %v959 = vunpack.c.l.b16 %v723
    %v960 = vunpack.c.h.b16 %v723
    %v961 = vunpack.c.l.b16 %v724
    %v962 = vunpack.c.h.b16 %v724
    %v963 = vunpack.c.l.b16 %v725
    %v964 = vunpack.c.h.b16 %v725
    %v965 = vunpack.c.l.b16 %v726
    %v966 = vunpack.c.h.b16 %v726
    %v967 = vunpack.c.l.b16 %v727
    %v968 = vunpack.c.h.b16 %v727
    %v969 = vunpack.c.l.b16 %v728
    %v970 = vunpack.c.h.b16 %v728
    %v971 = vunpack.c.l.b16 %v729
    %v972 = vunpack.c.h.b16 %v729
    %v973 = vunpack.c.l.b16 %v730
    %v974 = vunpack.c.h.b16 %v730
    %v975 = vunpack.c.l.b16 %v731
    %v976 = vunpack.c.h.b16 %v731
    %v977 = vunpack.c.l.b16 %v732
    %v978 = vunpack.c.h.b16 %v732
    %v979 = vunpack.c.l.b16 %v733
    %v980 = vunpack.c.h.b16 %v733
    %v981 = vunpack.c.l.b16 %v734
    %v982 = vunpack.c.h.b16 %v734
    %v983 = vunpack.c.l.b16 %v735
    %v984 = vunpack.c.h.b16 %v735
    %v985 = vunpack.c.l.b16 %v736
    %v986 = vunpack.c.h.b16 %v736
    %v987 = vunpack.c.l.b16 %v737
    %v988 = vunpack.c.h.b16 %v737
    %v989 = vunpack.c.l.b16 %v738
    %v990 = vunpack.c.h.b16 %v738
    %v991 = vunpack.c.l.b16 %v739
    %v992 = vunpack.c.h.b16 %v739
    %v993 = vunpack.c.l.b16 %v740
    %v994 = vunpack.c.h.b16 %v740
    %v995 = vunpack.c.l.b16 %v741
    %v996 = vunpack.c.h.b16 %v741
    %v997 = vunpack.c.l.b16 %v742
    %v998 = vunpack.c.h.b16 %v742
    %v999 = vunpack.c.l.b16 %v743
    %v1000 = vunpack.c.h.b16 %v743
    %v1001 = vunpack.c.l.b16 %v744
    %v1002 = vunpack.c.h.b16 %v744
    %v1003 = vunpack.c.l.b16 %v745
    %v1004 = vunpack.c.h.b16 %v745
    %v1005 = vunpack.c.l.b16 %v746
    %v1006 = vunpack.c.h.b16 %v746
    %v1007 = vunpack.c.l.b16 %v747
    %v1008 = vunpack.c.h.b16 %v747
    %v1009 = vunpack.c.l.b16 %v748
    %v1010 = vunpack.c.h.b16 %v748
    %v1011 = vunpack.c.l.b16 %v749
    %v1012 = vunpack.c.h.b16 %v749
    %v1013 = vunpack.c.l.b16 %v750
    %v1014 = vunpack.c.h.b16 %v750
    %v1015 = vunpack.c.l.b16 %v751
    %v1016 = vunpack.c.h.b16 %v751
    %v1017 = vunpack.c.l.b16 %v752
    %v1018 = vunpack.c.h.b16 %v752
    %v1019 = vunpack.c.l.b16 %v753
    %v1020 = vunpack.c.h.b16 %v753
    %v1021 = vunpack.c.l.b16 %v754
    %v1022 = vunpack.c.h.b16 %v754
    %v1023 = vunpack.c.l.b16 %v755
    %v1024 = vunpack.c.h.b16 %v755
    %v1025 = vunpack.c.l.b16 %v756
    %v1026 = vunpack.c.h.b16 %v756
    %v1027 = vunpack.c.l.b16 %v757
    %v1028 = vunpack.c.h.b16 %v757
    %v1029 = vunpack.c.l.b16 %v758
    %v1030 = vunpack.c.h.b16 %v758
    %v1031 = vunpack.c.l.b16 %v759
    %v1032 = vunpack.c.h.b16 %v759
    %v1033 = vunpack.c.l.b16 %v760
    %v1034 = vunpack.c.h.b16 %v760
    %v1035 = vunpack.c.l.b16 %v761
    %v1036 = vunpack.c.h.b16 %v761
    %v1037 = vunpack.c.l.b16 %v762
    %v1038 = vunpack.c.h.b16 %v762
    %v1039 = vunpack.c.l.b16 %v763
    %v1040 = vunpack.c.h.b16 %v763
    %v1041 = vunpack.c.l.b16 %v764
    %v1042 = vunpack.c.h.b16 %v764
    %v1043 = vunpack.c.l.b16 %v765
    %v1044 = vunpack.c.h.b16 %v765
    %v1045 = vunpack.c.l.b16 %v766
    %v1046 = vunpack.c.h.b16 %v766
    %v1047 = vunpack.c.l.b16 %v767
    %v1048 = vunpack.c.h.b16 %v767
    %v1049 = vunpack.c.l.b16 %v768
    %v1050 = vunpack.c.h.b16 %v768
    %v1051 = vunpack.c.l.b16 %v769
    %v1052 = vunpack.c.h.b16 %v769
    %v1053 = vunpack.c.l.b16 %v770
    %v1054 = vunpack.c.h.b16 %v770
    %v1055 = vunpack.c.l.b16 %v771
    %v1056 = vunpack.c.h.b16 %v771
    %v1057 = vunpack.c.l.b16 %v772
    %v1058 = vunpack.c.h.b16 %v772
    %v1059 = vunpack.c.l.b16 %v773
    %v1060 = vunpack.c.h.b16 %v773
    %v1061 = vunpack.c.l.b16 %v774
    %v1062 = vunpack.c.h.b16 %v774
    %v1063 = vunpack.c.l.b16 %v775
    %v1064 = vunpack.c.h.b16 %v775
    %v1065 = vunpack.c.l.b16 %v776
    %v1066 = vunpack.c.h.b16 %v776
    %v1067 = vunpack.c.l.b16 %v777
    %v1068 = vunpack.c.h.b16 %v777
    %v1069 = vunpack.c.l.b16 %v778
    %v1070 = vunpack.c.h.b16 %v778
    %v1071 = vunpack.c.l.b16 %v779
    %v1072 = vunpack.c.h.b16 %v779
    %v1073 = vunpack.c.l.b16 %v780
    %v1074 = vunpack.c.h.b16 %v780
    %v1075 = vunpack.c.l.b16 %v781
    %v1076 = vunpack.c.h.b16 %v781
    %v1077 = vunpack.c.l.b16 %v782
    %v1078 = vunpack.c.h.b16 %v782
    %v1079 = vunpack.c.l.b16 %v783
    %v1080 = vunpack.c.h.b16 %v783
    %v1081 = vunpack.c.l.b16 %v784
    %v1082 = vunpack.c.h.b16 %v784
    %v1083 = vunpack.c.l.b16 %v785
    %v1084 = vunpack.c.h.b16 %v785
    %v1085 = vunpack.c.l.b16 %v786
    %v1086 = vunpack.c.h.b16 %v786
    %v1087 = vunpack.c.l.b16 %v787
    %v1088 = vunpack.c.h.b16 %v787
    %v1089 = vunpack.c.l.b16 %v788
    %v1090 = vunpack.c.h.b16 %v788
    %v1091 = vunpack.c.l.b16 %v789
    %v1092 = vunpack.c.h.b16 %v789
    %v1093 = vpack.c.b16 %v893, %v891
    %v1094 = vpack.c.b16 %v894, %v892
    %v1095 = vpack.c.b16 %v897, %v895
    %v1096 = vpack.c.b16 %v898, %v896
    %v1097 = vpack.c.b16 %v901, %v899
    %v1098 = vpack.c.b16 %v902, %v900
    %v1099 = vpack.c.b16 %v905, %v903
    %v1100 = vpack.c.b16 %v906, %v904
    %v1101 = vpack.c.b16 %v909, %v907
    %v1102 = vpack.c.b16 %v910, %v908
    %v1103 = vpack.c.b16 %v913, %v911
    %v1104 = vpack.c.b16 %v914, %v912
    %v1105 = vpack.c.b16 %v917, %v915
    %v1106 = vpack.c.b16 %v918, %v916
    %v1107 = vpack.c.b16 %v921, %v919
    %v1108 = vpack.c.b16 %v922, %v920
    %v1109 = vpack.c.b16 %v925, %v923
    %v1110 = vpack.c.b16 %v926, %v924
    %v1111 = vpack.c.b16 %v929, %v927
    %v1112 = vpack.c.b16 %v930, %v928
    %v1113 = vpack.c.b16 %v933, %v931
    %v1114 = vpack.c.b16 %v934, %v932
    %v1115 = vpack.c.b16 %v937, %v935
    %v1116 = vpack.c.b16 %v938, %v936
    %v1117 = vpack.c.b16 %v941, %v939
    %v1118 = vpack.c.b16 %v942, %v940
    %v1119 = vpack.c.b16 %v945, %v943
    %v1120 = vpack.c.b16 %v946, %v944
    %v1121 = vpack.c.b16 %v949, %v947
    %v1122 = vpack.c.b16 %v950, %v948
    %v1123 = vpack.c.b16 %v953, %v951
    %v1124 = vpack.c.b16 %v954, %v952
    %v1125 = vpack.c.b16 %v957, %v955
    %v1126 = vpack.c.b16 %v958, %v956
    %v1127 = vpack.c.b16 %v961, %v959
    %v1128 = vpack.c.b16 %v962, %v960
    %v1129 = vpack.c.b16 %v965, %v963
    %v1130 = vpack.c.b16 %v966, %v964
    %v1131 = vpack.c.b16 %v969, %v967
    %v1132 = vpack.c.b16 %v970, %v968
    %v1133 = vpack.c.b16 %v973, %v971
    %v1134 = vpack.c.b16 %v974, %v972
    %v1135 = vpack.c.b16 %v977, %v975
    %v1136 = vpack.c.b16 %v978, %v976
    %v1137 = vpack.c.b16 %v981, %v979
    %v1138 = vpack.c.b16 %v982, %v980
    %v1139 = vpack.c.b16 %v985, %v983
    %v1140 = vpack.c.b16 %v986, %v984
    %v1141 = vpack.c.b16 %v989, %v987
    %v1142 = vpack.c.b16 %v990, %v988
    %v1143 = vpack.c.b16 %v993, %v991
    %v1144 = vpack.c.b16 %v994, %v992
    %v1145 = vpack.c.b16 %v997, %v995
    %v1146 = vpack.c.b16 %v998, %v996
    %v1147 = vpack.c.b16 %v1001, %v999
    %v1148 = vpack.c.b16 %v1002, %v1000
    %v1149 = vpack.c.b16 %v1005, %v1003
    %v1150 = vpack.c.b16 %v1006, %v1004
    %v1151 = vpack.c.b16 %v1009, %v1007
    %v1152 = vpack.c.b16 %v1010, %v1008
    %v1153 = vpack.c.b16 %v1013, %v1011
    %v1154 = vpack.c.b16 %v1014, %v1012
    %v1155 = vpack.c.b16 %v1017, %v1015
    %v1156 = vpack.c.b16 %v1018, %v1016
    %v1157 = vpack.c.b16 %v1021, %v1019
    %v1158 = vpack.c.b16 %v1022, %v1020
    %v1159 = vpack.c.b16 %v1025, %v1023
    %v1160 = vpack.c.b16 %v1026, %v1024
    %v1161 = vpack.c.b16 %v1029, %v1027
    %v1162 = vpack.c.b16 %v1030, %v1028
    %v1163 = vpack.c.b16 %v1033, %v1031
    %v1164 = vpack.c.b16 %v1034, %v1032
    %v1165 = vpack.c.b16 %v1037, %v1035
    %v1166 = vpack.c.b16 %v1038, %v1036
    %v1167 = vpack.c.b16 %v1041, %v1039
    %v1168 = vpack.c.b16 %v1042, %v1040
    %v1169 = vpack.c.b16 %v1045, %v1043
    %v1170 = vpack.c.b16 %v1046, %v1044
    %v1171 = vpack.c.b16 %v1049, %v1047
    %v1172 = vpack.c.b16 %v1050, %v1048
    %v1173 = vpack.c.b16 %v1053, %v1051
    %v1174 = vpack.c.b16 %v1054, %v1052
    %v1175 = vpack.c.b16 %v1057, %v1055
    %v1176 = vpack.c.b16 %v1058, %v1056
    %v1177 = vpack.c.b16 %v1061, %v1059
    %v1178 = vpack.c.b16 %v1062, %v1060
    %v1179 = vpack.c.b16 %v1065, %v1063
    %v1180 = vpack.c.b16 %v1066, %v1064
    %v1181 = vpack.c.b16 %v1069, %v1067
    %v1182 = vpack.c.b16 %v1070, %v1068
    %v1183 = vpack.c.b16 %v1073, %v1071
    %v1184 = vpack.c.b16 %v1074, %v1072
    %v1185 = vpack.c.b16 %v1077, %v1075
    %v1186 = vpack.c.b16 %v1078, %v1076
    %v1187 = vpack.c.b16 %v1081, %v1079
    %v1188 = vpack.c.b16 %v1082, %v1080
    %v1189 = vpack.c.b16 %v1085, %v1083
    %v1190 = vpack.c.b16 %v1086, %v1084
    %v1191 = vpack.c.b16 %v1089, %v1087
    %v1192 = vpack.c.b16 %v1090, %v1088
    %v1193 = vpack.c.b16 %v1091, %v1091
    %v1194 = vpack.c.b16 %v1092, %v1092
    %vm1295 = vcmask 318464
    %v1297 = vsel %vm1295, %v688, 0
    %vm1299 = vcmask 1042432
    %vm1300 = vcmask 1043456
    %v1301 = vsel %vm1299, 4294967295, 65535
    %v1302 = vsel %vm1300, %v1301, 0
    %v1304 = vand.u32 %v1193, %v1302
    %v1307 = vand.u32 %v1194, %v1302
    %1309 = vmatprep.subr.bf16.mxu0 %v1094
    %1310 = vmatpush1.bf16.msra.mxu0 %v1093
    %1311 = vmatprep.subr.bf16.mxu0 %v1096
    %1312 = vmatpush1.bf16.msra.mxu0 %v1095
    %1313 = vmatprep.subr.bf16.mxu0 %v1098
    %1314 = vmatpush1.bf16.msra.mxu0 %v1097
    %1315 = vmatprep.subr.bf16.mxu0 %v1100
    %1316 = vmatpush1.bf16.msra.mxu0 %v1099
    %1317 = vmatprep.subr.bf16.mxu0 %v1102
    %1318 = vmatpush1.bf16.msra.mxu0 %v1101
    %1319 = vmatprep.subr.bf16.mxu0 %v1104
    %1320 = vmatpush1.bf16.msra.mxu0 %v1103
    %1321 = vmatprep.subr.bf16.mxu0 %v1106
    %1322 = vmatpush1.bf16.msra.mxu0 %v1105
    %1323 = vmatprep.subr.bf16.mxu0 %v1108
    %1324 = vmatpush1.bf16.msra.mxu0 %v1107
    %1325 = vmatprep.subr.bf16.mxu0 %v1110
    %1326 = vmatpush1.bf16.msra.mxu0 %v1109
    %1327 = vmatprep.subr.bf16.mxu0 %v1112
    %1328 = vmatpush1.bf16.msra.mxu0 %v1111
    %1329 = vmatprep.subr.bf16.mxu0 %v1114
    %1330 = vmatpush1.bf16.msra.mxu0 %v1113
    %1331 = vmatprep.subr.bf16.mxu0 %v1116
    %1332 = vmatpush1.bf16.msra.mxu0 %v1115
    %1333 = vmatprep.subr.bf16.mxu0 %v1118
    %1334 = vmatpush1.bf16.msra.mxu0 %v1117
    %1335 = vmatprep.subr.bf16.mxu0 %v1120
    %1336 = vmatpush1.bf16.msra.mxu0 %v1119
    %1337 = vmatprep.subr.bf16.mxu0 %v1122
    %1338 = vmatpush1.bf16.msra.mxu0 %v1121
    %1339 = vmatprep.subr.bf16.mxu0 %v1124
    %1340 = vmatpush1.bf16.msra.mxu0 %v1123
    %1341 = vmatprep.mubr.bf16.mxu0 %v683
    %1342 = vmatmul.mubr.bf16.gmra.mrb[0].mxu0 %v682
    %v1343 = vpop.f32.mrb[0].mxu0
    %v1344 = vadd.f32 0.0, %v1343
    %v1345 = vpop.f32.mrb[0].mxu0
    %v1346 = vadd.f32 0.0, %v1345
    %v1347 = vpop.f32.mrb[0].mxu0
    %v1348 = vpop.f32.mrb[0].mxu0
    %1349 = vdwg.mxu0
    %1350 = vmatprep.subr.bf16.mxu0 %v1126
    %1351 = vmatpush1.bf16.msra.mxu0 %v1125
    %1352 = vmatprep.subr.bf16.mxu0 %v1128
    %1353 = vmatpush1.bf16.msra.mxu0 %v1127
    %1354 = vmatprep.subr.bf16.mxu0 %v1130
    %1355 = vmatpush1.bf16.msra.mxu0 %v1129
    %1356 = vmatprep.subr.bf16.mxu0 %v1132
    %1357 = vmatpush1.bf16.msra.mxu0 %v1131
    %1358 = vmatprep.subr.bf16.mxu0 %v1134
    %1359 = vmatpush1.bf16.msra.mxu0 %v1133
    %1360 = vmatprep.subr.bf16.mxu0 %v1136
    %1361 = vmatpush1.bf16.msra.mxu0 %v1135
    %1362 = vmatprep.subr.bf16.mxu0 %v1138
    %1363 = vmatpush1.bf16.msra.mxu0 %v1137
    %1364 = vmatprep.subr.bf16.mxu0 %v1140
    %1365 = vmatpush1.bf16.msra.mxu0 %v1139
    %1366 = vmatprep.subr.bf16.mxu0 %v1142
    %1367 = vmatpush1.bf16.msra.mxu0 %v1141
    %1368 = vmatprep.subr.bf16.mxu0 %v1144
    %1369 = vmatpush1.bf16.msra.mxu0 %v1143
    %1370 = vmatprep.subr.bf16.mxu0 %v1146
    %1371 = vmatpush1.bf16.msra.mxu0 %v1145
    %1372 = vmatprep.subr.bf16.mxu0 %v1148
    %1373 = vmatpush1.bf16.msra.mxu0 %v1147
    %1374 = vmatprep.subr.bf16.mxu0 %v1150
    %1375 = vmatpush1.bf16.msra.mxu0 %v1149
    %1376 = vmatprep.subr.bf16.mxu0 %v1152
    %1377 = vmatpush1.bf16.msra.mxu0 %v1151
    %1378 = vmatprep.subr.bf16.mxu0 %v1154
    %1379 = vmatpush1.bf16.msra.mxu0 %v1153
    %1380 = vmatprep.subr.bf16.mxu0 %v1156
    %1381 = vmatpush1.bf16.msra.mxu0 %v1155
    %1382 = vmatprep.mubr.bf16.mxu0 %v685
    %1383 = vmatmul.mubr.bf16.gmra.mrb[0].mxu0 %v684
    %v1384 = vpop.f32.mrb[0].mxu0
    %v1385 = vadd.f32 %v1344, %v1384
    %v1386 = vpop.f32.mrb[0].mxu0
    %v1387 = vadd.f32 %v1346, %v1386
    %v1388 = vpop.f32.mrb[0].mxu0
    %v1389 = vpop.f32.mrb[0].mxu0
    %1390 = vdwg.mxu0
    %1391 = vmatprep.subr.bf16.mxu0 %v1158
    %1392 = vmatpush1.bf16.msra.mxu0 %v1157
    %1393 = vmatprep.subr.bf16.mxu0 %v1160
    %1394 = vmatpush1.bf16.msra.mxu0 %v1159
    %1395 = vmatprep.subr.bf16.mxu0 %v1162
    %1396 = vmatpush1.bf16.msra.mxu0 %v1161
    %1397 = vmatprep.subr.bf16.mxu0 %v1164
    %1398 = vmatpush1.bf16.msra.mxu0 %v1163
    %1399 = vmatprep.subr.bf16.mxu0 %v1166
    %1400 = vmatpush1.bf16.msra.mxu0 %v1165
    %1401 = vmatprep.subr.bf16.mxu0 %v1168
    %1402 = vmatpush1.bf16.msra.mxu0 %v1167
    %1403 = vmatprep.subr.bf16.mxu0 %v1170
    %1404 = vmatpush1.bf16.msra.mxu0 %v1169
    %1405 = vmatprep.subr.bf16.mxu0 %v1172
    %1406 = vmatpush1.bf16.msra.mxu0 %v1171
    %1407 = vmatprep.subr.bf16.mxu0 %v1174
    %1408 = vmatpush1.bf16.msra.mxu0 %v1173
    %1409 = vmatprep.subr.bf16.mxu0 %v1176
    %1410 = vmatpush1.bf16.msra.mxu0 %v1175
    %1411 = vmatprep.subr.bf16.mxu0 %v1178
    %1412 = vmatpush1.bf16.msra.mxu0 %v1177
    %1413 = vmatprep.subr.bf16.mxu0 %v1180
    %1414 = vmatpush1.bf16.msra.mxu0 %v1179
    %1415 = vmatprep.subr.bf16.mxu0 %v1182
    %1416 = vmatpush1.bf16.msra.mxu0 %v1181
    %1417 = vmatprep.subr.bf16.mxu0 %v1184
    %1418 = vmatpush1.bf16.msra.mxu0 %v1183
    %1419 = vmatprep.subr.bf16.mxu0 %v1186
    %1420 = vmatpush1.bf16.msra.mxu0 %v1185
    %1421 = vmatprep.subr.bf16.mxu0 %v1188
    %1422 = vmatpush1.bf16.msra.mxu0 %v1187
    %1423 = vmatprep.mubr.bf16.mxu0 %v687
    %1424 = vmatmul.mubr.bf16.gmra.mrb[0].mxu0 %v686
    %v1425 = vpop.f32.mrb[0].mxu0
    %v1426 = vadd.f32 %v1385, %v1425
    %v1427 = vpop.f32.mrb[0].mxu0
    %v1428 = vadd.f32 %v1387, %v1427
    %v1429 = vpop.f32.mrb[0].mxu0
    %v1430 = vpop.f32.mrb[0].mxu0
    %1431 = vdwg.mxu0
    %1432 = vmatprep.subr.bf16.mxu0 %v1190
    %1433 = vmatpush1.bf16.msra.mxu0 %v1189
    %1434 = vmatprep.subr.bf16.mxu0 %v1192
    %1435 = vmatpush1.bf16.msra.mxu0 %v1191
    %1436 = vmatprep.subr.bf16.mxu0 %v1307
    %1437 = vmatpush1.bf16.msra.mxu0 %v1304
    %1438 = vmatprep.subr.bf16.mxu0 0
    %1439 = vmatpush1.bf16.msra.mxu0 0
    %1440 = vmatprep.subr.bf16.mxu0 0
    %1441 = vmatpush1.bf16.msra.mxu0 0
    %1442 = vmatprep.subr.bf16.mxu0 0
    %1443 = vmatpush1.bf16.msra.mxu0 0
    %1444 = vmatprep.subr.bf16.mxu0 0
    %1445 = vmatpush1.bf16.msra.mxu0 0
    %1446 = vmatprep.subr.bf16.mxu0 0
    %1447 = vmatpush1.bf16.msra.mxu0 0
    %1448 = vmatprep.subr.bf16.mxu0 0
    %1449 = vmatpush1.bf16.msra.mxu0 0
    %1450 = vmatprep.subr.bf16.mxu0 0
    %1451 = vmatpush1.bf16.msra.mxu0 0
    %1452 = vmatprep.subr.bf16.mxu0 0
    %1453 = vmatpush1.bf16.msra.mxu0 0
    %1454 = vmatprep.subr.bf16.mxu0 0
    %1455 = vmatpush1.bf16.msra.mxu0 0
    %1456 = vmatprep.subr.bf16.mxu0 0
    %1457 = vmatpush1.bf16.msra.mxu0 0
    %1458 = vmatprep.subr.bf16.mxu0 0
    %1459 = vmatpush1.bf16.msra.mxu0 0
    %1460 = vmatprep.subr.bf16.mxu0 0
    %1461 = vmatpush1.bf16.msra.mxu0 0
    %1462 = vmatprep.subr.bf16.mxu0 0
    %1463 = vmatpush1.bf16.msra.mxu0 0
    %1464 = vmatprep.mubr.bf16.mxu0 0
    %1465 = vmatmul.mubr.bf16.gmra.mrb[0].mxu0 %v1297
    %v1466 = vpop.f32.mrb[0].mxu0
    %v1467 = vadd.f32 %v1426, %v1466
    %v1468 = vpop.f32.mrb[0].mxu0
    %v1469 = vadd.f32 %v1428, %v1468
    %v1470 = vpop.f32.mrb[0].mxu0
    %v1471 = vpop.f32.mrb[0].mxu0
    %1472 = vdwg.mxu0
    %v1473 = vpack.c.bf16 %v1467, %v1467
    %v1474 = vpack.c.bf16 %v1469, %v1469
    %v1477 = vrot.slane %v1473, 4
    %v1478 = vrot.slane %v1474, 4
    %1479 = vrot.lane.b32.xlu0 %v1477, 127
    %v1480 = vpop.permute.xlu0 %1479
    %1481 = vrot.lane.b32.xlu0 %v1478, 127
    %v1482 = vpop.permute.xlu0 %1481
    %vm1483 = vcmask 1039360
    %v1484 = vsel %vm1483, %v1480, %v1482
    %1485 = vrot.lane.b32.xlu0 %v1473, 126
    %v1486 = vpop.permute.xlu0 %1485
    %1487 = vrot.lane.b32.xlu0 %v1474, 126
    %v1488 = vpop.permute.xlu0 %1487
    %vm1489 = vcmask 1031168
    %v1490 = vsel %vm1489, %v1486, %v1488
    %1491 = vrot.lane.b32.xlu0 %v1477, 112
    %v1492 = vpop.permute.xlu0 %1491
    %1493 = vrot.lane.b32.xlu0 %v1478, 112
    %v1494 = vpop.permute.xlu0 %1493
    %vm1495 = vcmask 916480
    %v1496 = vsel %vm1495, %v1492, %v1494
    %1497 = vrot.lane.b32.xlu0 %v1473, 111
    %v1498 = vpop.permute.xlu0 %1497
    %1499 = vrot.lane.b32.xlu0 %v1474, 111
    %v1500 = vpop.permute.xlu0 %1499
    %vm1501 = vcmask 908288
    %v1502 = vsel %vm1501, %v1498, %v1500
    %1503 = vrot.lane.b32.xlu0 %v1477, 110
    %v1504 = vpop.permute.xlu0 %1503
    %1505 = vrot.lane.b32.xlu0 %v1478, 110
    %v1506 = vpop.permute.xlu0 %1505
    %vm1507 = vcmask 900096
    %v1508 = vsel %vm1507, %v1504, %v1506
    %1509 = vrot.lane.b32.xlu0 %v1473, 96
    %v1510 = vpop.permute.xlu0 %1509
    %1511 = vrot.lane.b32.xlu0 %v1474, 96
    %v1512 = vpop.permute.xlu0 %1511
    %vm1513 = vcmask 785408
    %v1514 = vsel %vm1513, %v1510, %v1512
    %1515 = vrot.lane.b32.xlu0 %v1477, 95
    %v1516 = vpop.permute.xlu0 %1515
    %1517 = vrot.lane.b32.xlu0 %v1478, 95
    %v1518 = vpop.permute.xlu0 %1517
    %vm1519 = vcmask 777216
    %v1520 = vsel %vm1519, %v1516, %v1518
    %1521 = vrot.lane.b32.xlu0 %v1473, 94
    %v1522 = vpop.permute.xlu0 %1521
    %1523 = vrot.lane.b32.xlu0 %v1474, 94
    %v1524 = vpop.permute.xlu0 %1523
    %vm1525 = vcmask 769024
    %v1526 = vsel %vm1525, %v1522, %v1524
    %v1529 = vsel %vm1300, %v1473, %v1484
    %v1533 = vsel %vm1300, %v1474, %v1482
    %v1537 = vsel %vm1300, %v1490, %v1496
    %v1541 = vsel %vm1300, %v1488, %v1494
    %v1545 = vsel %vm1300, %v1502, %v1508
    %v1549 = vsel %vm1300, %v1500, %v1506
    %v1553 = vsel %vm1300, %v1514, %v1520
    %v1557 = vsel %vm1300, %v1512, %v1518
    %v1559 = vld [vmem:[%s3] sm:$0xf]
    %v1560 = vld [vmem:[%s3 + $0x4] sm:$0xf]
    %v1561 = vld [vmem:[%s4] sm:$0xff]
    %v1562 = vld [vmem:[%s4 + $0x8] sm:$0xff]
    %1564 = vset.pattern.permute.xlu0 0
    %1565 = vperm.xlu0 %1564, %v1561
    %v1566 = vpop.permute.xlu0 %1565
    %1569 = vset.pattern.permute.xlu0 0
    %1570 = vperm.xlu0 %1569, %v1562
    %v1571 = vpop.permute.xlu0 %1570
    %v1575 = vunpack.c.l.b16 %v1559
    %v1576 = vunpack.c.l.b16 %v1560
    %v1577 = vpack.c.b16 %v1576, %v1575
    %vm1578 = vcmask 588800
    %v1580 = vsel %vm1578, %v1577, 0
    %v1583 = vsel %vm1300, %v1526, 0
    %v1586 = vsel %vm1300, %v1524, 0
    %1588 = vmatprep.subr.bf16.mxu0 %v1533
    %1589 = vmatpush1.bf16.msra.mxu0 %v1529
    %1590 = vmatprep.subr.bf16.mxu0 %v1541
    %1591 = vmatpush1.bf16.msra.mxu0 %v1537
    %1592 = vmatprep.subr.bf16.mxu0 %v1549
    %1593 = vmatpush1.bf16.msra.mxu0 %v1545
    %1594 = vmatprep.subr.bf16.mxu0 %v1557
    %1595 = vmatpush1.bf16.msra.mxu0 %v1553
    %1596 = vmatprep.subr.bf16.mxu0 %v1586
    %1597 = vmatpush1.bf16.msra.mxu0 %v1583
    %1598 = vmatprep.subr.bf16.mxu0 0
    %1599 = vmatpush1.bf16.msra.mxu0 0
    %1600 = vmatprep.subr.bf16.mxu0 0
    %1601 = vmatpush1.bf16.msra.mxu0 0
    %1602 = vmatprep.subr.bf16.mxu0 0
    %1603 = vmatpush1.bf16.msra.mxu0 0
    %1604 = vmatprep.subr.bf16.mxu0 0
    %1605 = vmatpush1.bf16.msra.mxu0 0
    %1606 = vmatprep.subr.bf16.mxu0 0
    %1607 = vmatpush1.bf16.msra.mxu0 0
    %1608 = vmatprep.subr.bf16.mxu0 0
    %1609 = vmatpush1.bf16.msra.mxu0 0
    %1610 = vmatprep.subr.bf16.mxu0 0
    %1611 = vmatpush1.bf16.msra.mxu0 0
    %1612 = vmatprep.subr.bf16.mxu0 0
    %1613 = vmatpush1.bf16.msra.mxu0 0
    %1614 = vmatprep.subr.bf16.mxu0 0
    %1615 = vmatpush1.bf16.msra.mxu0 0
    %1616 = vmatprep.subr.bf16.mxu0 0
    %1617 = vmatpush1.bf16.msra.mxu0 0
    %1618 = vmatprep.subr.bf16.mxu0 0
    %1619 = vmatpush1.bf16.msra.mxu0 0
    %1620 = vmatprep.mubr.bf16.mxu0 0
    %1621 = vmatmul.mubr.bf16.gmra.mrb[0].mxu0 %v1580
    %v1622 = vpop.f32.mrb[0].mxu0
    %v1623 = vadd.f32 %v1566, %v1622
    %v1624 = vpop.f32.mrb[0].mxu0
    %v1625 = vadd.f32 %v1566, %v1624
    %v1626 = vpop.f32.mrb[0].mxu0
    %v1627 = vadd.f32 %v1571, %v1626
    %v1628 = vpop.f32.mrb[0].mxu0
    %v1629 = vadd.f32 %v1571, %v1628
    %1630 = vdwg.mxu0
    %v1631 = vmax.f32 %v1623, 0.0
    %v1632 = vmax.f32 %v1625, 0.0
    %v1633 = vmax.f32 %v1627, 0.0
    %v1634 = vmax.f32 %v1629, 0.0
    %1639 = vrot.lane.b32.xlu0 %v1631, 127
    %v1640 = vpop.permute.xlu0 %1639
    %1641 = vrot.lane.b32.xlu0 %v1632, 127
    %v1642 = vpop.permute.xlu0 %1641
    %1643 = vrot.lane.b32.xlu0 %v1633, 127
    %v1644 = vpop.permute.xlu0 %1643
    %1645 = vrot.lane.b32.xlu0 %v1634, 127
    %v1646 = vpop.permute.xlu0 %1645
    %v1647 = vsel %vm177, %v1640, %v1642
    %v1648 = vsel %vm177, %v1644, %v1646
    %v1653 = vmax.f32 %v1631, %v1647
    %v1654 = vmax.f32 %v1632, %v1642
    %v1655 = vmax.f32 %v1633, %v1648
    %v1656 = vmax.f32 %v1634, %v1646
    %1661 = vrot.lane.b32.xlu0 %v1653, 112
    %v1662 = vpop.permute.xlu0 %1661
    %1663 = vrot.lane.b32.xlu0 %v1654, 112
    %v1664 = vpop.permute.xlu0 %1663
    %1665 = vrot.lane.b32.xlu0 %v1655, 112
    %v1666 = vpop.permute.xlu0 %1665
    %1667 = vrot.lane.b32.xlu0 %v1656, 112
    %v1668 = vpop.permute.xlu0 %1667
    %vm1669 = vcmask 916480
    %v1670 = vsel %vm1669, %v1662, %v1664
    %v1671 = vsel %vm1669, %v1666, %v1668
    %v1676 = vmax.f32 %v1653, %v1670
    %v1677 = vmax.f32 %v1654, %v1664
    %v1678 = vmax.f32 %v1655, %v1671
    %v1679 = vmax.f32 %v1656, %v1668
    %v1680 = vpack.c.bf16 %v1678, %v1676
    %v1681 = vpack.c.bf16 %v1679, %v1677
    %v1682 = vld [vmem:[%s6] sm:$0xf]
    %v1683 = vld [vmem:[%s6 + $0x4] sm:$0xf]
    %v1684 = vld [vmem:[%s6 + $0x8] sm:$0xf]
    %v1685 = vld [vmem:[%s6 + $0xc] sm:$0xf]
    %v1686 = vld [vmem:[%s6 + $0x10] sm:$0xf]
    %v1687 = vld [vmem:[%s6 + $0x14] sm:$0xf]
    %v1688 = vld [vmem:[%s6 + $0x18] sm:$0xf]
    %v1689 = vld [vmem:[%s6 + $0x1c] sm:$0xf]
    %v1690 = vld [vmem:[%s6 + $0x20] sm:$0xf]
    %v1691 = vld [vmem:[%s6 + $0x24] sm:$0xf]
    %v1692 = vld [vmem:[%s6 + $0x28] sm:$0xf]
    %v1693 = vld [vmem:[%s6 + $0x2c] sm:$0xf]
    %v1694 = vld [vmem:[%s6 + $0x30] sm:$0xf]
    %v1695 = vld [vmem:[%s6 + $0x34] sm:$0xf]
    %v1696 = vld [vmem:[%s6 + $0x38] sm:$0xf]
    %v1697 = vld [vmem:[%s6 + $0x3c] sm:$0xf]
    %v1698 = vld [vmem:[%s6 + $0x40] sm:$0xf]
    %v1699 = vld [vmem:[%s6 + $0x44] sm:$0xf]
    %v1700 = vld [vmem:[%s6 + $0x48] sm:$0xf]
    %v1701 = vld [vmem:[%s6 + $0x4c] sm:$0xf]
    %v1702 = vld [vmem:[%s6 + $0x50] sm:$0xf]
    %v1703 = vld [vmem:[%s6 + $0x54] sm:$0xf]
    %v1704 = vld [vmem:[%s6 + $0x58] sm:$0xf]
    %v1705 = vld [vmem:[%s6 + $0x5c] sm:$0xf]
    %v1706 = vld [vmem:[%s6 + $0x60] sm:$0xf]
    %v1707 = vld [vmem:[%s6 + $0x64] sm:$0x7]
    %v1734 = vunpack.c.l.b16 %v1682
    %v1735 = vunpack.c.l.b16 %v1683
    %v1736 = vunpack.c.l.b16 %v1684
    %v1737 = vunpack.c.l.b16 %v1685
    %v1738 = vunpack.c.l.b16 %v1686
    %v1739 = vunpack.c.l.b16 %v1687
    %v1740 = vunpack.c.l.b16 %v1688
    %v1741 = vunpack.c.l.b16 %v1689
    %v1742 = vunpack.c.l.b16 %v1690
    %v1743 = vunpack.c.l.b16 %v1691
    %v1744 = vunpack.c.l.b16 %v1692
    %v1745 = vunpack.c.l.b16 %v1693
    %v1746 = vunpack.c.l.b16 %v1694
    %v1747 = vunpack.c.l.b16 %v1695
    %v1748 = vunpack.c.l.b16 %v1696
    %v1749 = vunpack.c.l.b16 %v1697
    %v1750 = vunpack.c.l.b16 %v1698
    %v1751 = vunpack.c.l.b16 %v1699
    %v1752 = vunpack.c.l.b16 %v1700
    %v1753 = vunpack.c.l.b16 %v1701
    %v1754 = vunpack.c.l.b16 %v1702
    %v1755 = vunpack.c.l.b16 %v1703
    %v1756 = vunpack.c.l.b16 %v1704
    %v1757 = vunpack.c.l.b16 %v1705
    %v1758 = vunpack.c.l.b16 %v1706
    %v1759 = vunpack.c.l.b16 %v1707
    %v1760 = vpack.c.b16 %v1735, %v1734
    %v1761 = vpack.c.b16 %v1737, %v1736
    %v1762 = vpack.c.b16 %v1739, %v1738
    %v1763 = vpack.c.b16 %v1741, %v1740
    %v1764 = vpack.c.b16 %v1743, %v1742
    %v1765 = vpack.c.b16 %v1745, %v1744
    %v1766 = vpack.c.b16 %v1747, %v1746
    %v1767 = vpack.c.b16 %v1749, %v1748
    %v1768 = vpack.c.b16 %v1751, %v1750
    %v1769 = vpack.c.b16 %v1753, %v1752
    %v1770 = vpack.c.b16 %v1755, %v1754
    %v1771 = vpack.c.b16 %v1757, %v1756
    %v1772 = vpack.c.b16 %v1759, %v1758
    %vm1785 = vcmask 629760
    %v1787 = vsel %vm1785, %v1681, 0
    %vm1789 = vcmask 1045504
    %vm1790 = vcmask 1046528
    %v1791 = vsel %vm1789, 4294967295, 65535
    %v1792 = vsel %vm1790, %v1791, 0
    %v1794 = vand.u32 %v1772, %v1792
    %1796 = vmatprep.subr.bf16.mxu0 0
    %1797 = vmatpush1.bf16.msra.mxu0 %v1760
    %1798 = vmatprep.subr.bf16.mxu0 0
    %1799 = vmatpush1.bf16.msra.mxu0 %v1761
    %1800 = vmatprep.subr.bf16.mxu0 0
    %1801 = vmatpush1.bf16.msra.mxu0 %v1762
    %1802 = vmatprep.subr.bf16.mxu0 0
    %1803 = vmatpush1.bf16.msra.mxu0 %v1763
    %1804 = vmatprep.subr.bf16.mxu0 0
    %1805 = vmatpush1.bf16.msra.mxu0 %v1764
    %1806 = vmatprep.subr.bf16.mxu0 0
    %1807 = vmatpush1.bf16.msra.mxu0 %v1765
    %1808 = vmatprep.subr.bf16.mxu0 0
    %1809 = vmatpush1.bf16.msra.mxu0 %v1766
    %1810 = vmatprep.subr.bf16.mxu0 0
    %1811 = vmatpush1.bf16.msra.mxu0 %v1767
    %1812 = vmatprep.subr.bf16.mxu0 0
    %1813 = vmatpush1.bf16.msra.mxu0 %v1768
    %1814 = vmatprep.subr.bf16.mxu0 0
    %1815 = vmatpush1.bf16.msra.mxu0 %v1769
    %1816 = vmatprep.subr.bf16.mxu0 0
    %1817 = vmatpush1.bf16.msra.mxu0 %v1770
    %1818 = vmatprep.subr.bf16.mxu0 0
    %1819 = vmatpush1.bf16.msra.mxu0 %v1771
    %1820 = vmatprep.subr.bf16.mxu0 0
    %1821 = vmatpush1.bf16.msra.mxu0 %v1794
    %1822 = vmatprep.subr.bf16.mxu0 0
    %1823 = vmatpush1.bf16.msra.mxu0 0
    %1824 = vmatprep.subr.bf16.mxu0 0
    %1825 = vmatpush1.bf16.msra.mxu0 0
    %1826 = vmatprep.subr.bf16.mxu0 0
    %1827 = vmatpush1.bf16.msra.mxu0 0
    %1828 = vmatprep.mubr.bf16.mxu0 %v1787
    %1829 = vmatmul.mubr.bf16.gmra.mrb[0].mxu0 %v1680
    %v1830 = vpop.f32.mrb[0].mxu0
    %v1831 = vadd.f32 0.0, %v1830
    %v1832 = vpop.f32.mrb[0].mxu0
    %v1833 = vpop.f32.mrb[0].mxu0
    %v1834 = vadd.f32 0.0, %v1833
    %v1835 = vpop.f32.mrb[0].mxu0
    %1836 = vdwg.mxu0
    %v1837 = vld [vmem:[%s7] sm:$0xff]
    %v1838 = vld [vmem:[%s7 + $0x8] sm:$0xff]
    %v1839 = vmul.f32 %v1831, %v1837
    %v1840 = vmul.f32 %v1834, %v1838
    %vm1841 = vcmask 523264
    %v1842 = vsel %vm1841, %v1839, 0.0
    %v1843 = vsel %vm1841, %v1840, 0.0
    %v1844 = vadd.f32 %v1842, %v1843
    %v1845 = vrot.slane %v1844, 4
    %v1846 = vadd.f32 %v1844, %v1845
    %v1847 = vrot.slane %v1846, 2
    %v1848 = vadd.f32 %v1846, %v1847
    %v1849 = vrot.slane %v1848, 1
    %v1850 = vadd.f32 %v1848, %v1849
    %v1851 = vld [vmem:[%s8] sm:$0xff]
    %v1852 = vld [vmem:[%s8 + $0x8] sm:$0xff]
    %v1853 = vld [vmem:[%s8 + $0x10] sm:$0xff]
    %v1854 = vld [vmem:[%s8 + $0x18] sm:$0xff]
    %v1855 = vld [vmem:[%s8 + $0x20] sm:$0xff]
    %v1856 = vld [vmem:[%s8 + $0x28] sm:$0xff]
    %v1857 = vld [vmem:[%s8 + $0x30] sm:$0xff]
    %v1858 = vld [vmem:[%s8 + $0x38] sm:$0xff]
    %v1859 = vld [vmem:[%s9] sm:$0x1]
    %v1861 = vsel %vm1841, %v1850, 0
    %1863 = vmatprep.subr.mxu0 0.0
    %1864 = vmatpush1.msra.mxu0 %v1851
    %1865 = vmatprep.subr.mxu0 0.0
    %1866 = vmatpush1.msra.mxu0 %v1852
    %1867 = vmatprep.subr.mxu0 0.0
    %1868 = vmatpush1.msra.mxu0 %v1853
    %1869 = vmatprep.subr.mxu0 0.0
    %1870 = vmatpush1.msra.mxu0 %v1854
    %1871 = vmatprep.subr.mxu0 0.0
    %1872 = vmatpush1.msra.mxu0 %v1855
    %1873 = vmatprep.subr.mxu0 0.0
    %1874 = vmatpush1.msra.mxu0 %v1856
    %1875 = vmatprep.subr.mxu0 0.0
    %1876 = vmatpush1.msra.mxu0 %v1857
    %1877 = vmatprep.subr.mxu0 0.0
    %1878 = vmatpush1.msra.mxu0 %v1858
    %1879 = vmatprep.subr.mxu0 0.0
    %1880 = vmatpush1.msra.mxu0 0.0
    %1881 = vmatprep.subr.mxu0 0.0
    %1882 = vmatpush1.msra.mxu0 0.0
    %1883 = vmatprep.subr.mxu0 0.0
    %1884 = vmatpush1.msra.mxu0 0.0
    %1885 = vmatprep.subr.mxu0 0.0
    %1886 = vmatpush1.msra.mxu0 0.0
    %1887 = vmatprep.subr.mxu0 0.0
    %1888 = vmatpush1.msra.mxu0 0.0
    %1889 = vmatprep.subr.mxu0 0.0
    %1890 = vmatpush1.msra.mxu0 0.0
    %1891 = vmatprep.subr.mxu0 0.0
    %1892 = vmatpush1.msra.mxu0 0.0
    %1893 = vmatprep.subr.mxu0 0.0
    %1894 = vmatpush1.msra.mxu0 0.0
    %1895 = vmatprep.subr.mxu0 0.0
    %1896 = vmatpush1.msra.mxu0 0.0
    %1897 = vmatprep.subr.mxu0 0.0
    %1898 = vmatpush1.msra.mxu0 0.0
    %1899 = vmatprep.subr.mxu0 0.0
    %1900 = vmatpush1.msra.mxu0 0.0
    %1901 = vmatprep.subr.mxu0 0.0
    %1902 = vmatpush1.msra.mxu0 0.0
    %1903 = vmatprep.subr.mxu0 0.0
    %1904 = vmatpush1.msra.mxu0 0.0
    %1905 = vmatprep.subr.mxu0 0.0
    %1906 = vmatpush1.msra.mxu0 0.0
    %1907 = vmatprep.subr.mxu0 0.0
    %1908 = vmatpush1.msra.mxu0 0.0
    %1909 = vmatprep.subr.mxu0 0.0
    %1910 = vmatpush1.msra.mxu0 0.0
    %1911 = vmatprep.subr.mxu0 0.0
    %1912 = vmatpush1.msra.mxu0 0.0
    %1913 = vmatprep.subr.mxu0 0.0
    %1914 = vmatpush1.msra.mxu0 0.0
    %1915 = vmatprep.subr.mxu0 0.0
    %1916 = vmatpush1.msra.mxu0 0.0
    %1917 = vmatprep.subr.mxu0 0.0
    %1918 = vmatpush1.msra.mxu0 0.0
    %1919 = vmatprep.subr.mxu0 0.0
    %1920 = vmatpush1.msra.mxu0 0.0
    %1921 = vmatprep.subr.mxu0 0.0
    %1922 = vmatpush1.msra.mxu0 0.0
    %1923 = vmatprep.subr.mxu0 0.0
    %1924 = vmatpush1.msra.mxu0 0.0
    %1925 = vmatprep.subr.mxu0 0.0
    %1926 = vmatpush1.msra.mxu0 0.0
    %1927 = vmatprep.mubr.f32.mxu0 0.0
    %1928 = vmatmul.mubr.f32.gmra.mrb[0].mxu0 %v1861
    %v1929 = vpop.f32.mrb[0].mxu0
    %v1930 = vadd.f32 %v1859, %v1929
    %v1931 = vpop.f32.mrb[0].mxu0
    %1932 = vdwg.mxu0
    %s1933 = scalar_lea.vmem %s0, 8
    %v1934 = vld [vmem:[%s1933] sm:$0xff]
    %v1935 = vunpack.c.l.bf16 %v1934
    %v1936 = vunpack.c.h.bf16 %v1934
    %v1939 = vlaneseq
    %v1940 = vshrl.u32 %v1939, 7
    %v1941 = vsub.s32 0, %v1940
    %v1942 = vrot.slane %v1935, %v1941
    %v1943 = vlaneseq
    %v1944 = vshrl.u32 %v1943, 7
    %v1945 = vsub.s32 2, %v1944
    %v1946 = vrot.slane %v1935, %v1945
    %v1947 = vlaneseq
    %v1948 = vshrl.u32 %v1947, 7
    %v1949 = vsub.s32 4, %v1948
    %v1950 = vrot.slane %v1935, %v1949
    %v1951 = vlaneseq
    %v1952 = vshrl.u32 %v1951, 7
    %v1953 = vsub.s32 6, %v1952
    %v1954 = vrot.slane %v1935, %v1953
    %v1955 = vlaneseq
    %v1956 = vshrl.u32 %v1955, 7
    %v1957 = vsub.s32 0, %v1956
    %v1958 = vrot.slane %v1936, %v1957
    %v1959 = vlaneseq
    %v1960 = vshrl.u32 %v1959, 7
    %v1961 = vsub.s32 2, %v1960
    %v1962 = vrot.slane %v1936, %v1961
    %v1963 = vlaneseq
    %v1964 = vshrl.u32 %v1963, 7
    %v1965 = vsub.s32 4, %v1964
    %v1966 = vrot.slane %v1936, %v1965
    %v1974 = vlaneseq
    %v1975 = vshrl.u32 %v1974, 7
    %v1976 = vsub.s32 0, %v1975
    %v1977 = vrot.slane %v1942, %v1976
    %v1978 = vlaneseq
    %v1979 = vshrl.u32 %v1978, 7
    %v1980 = vsub.s32 0, %v1979
    %v1981 = vrot.slane %v1946, %v1980
    %v1982 = vlaneseq
    %v1983 = vshrl.u32 %v1982, 7
    %v1984 = vsub.s32 0, %v1983
    %v1985 = vrot.slane %v1950, %v1984
    %v1986 = vlaneseq
    %v1987 = vshrl.u32 %v1986, 7
    %v1988 = vsub.s32 0, %v1987
    %v1989 = vrot.slane %v1954, %v1988
    %v1990 = vlaneseq
    %v1991 = vshrl.u32 %v1990, 7
    %v1992 = vsub.s32 0, %v1991
    %v1993 = vrot.slane %v1958, %v1992
    %v1994 = vlaneseq
    %v1995 = vshrl.u32 %v1994, 7
    %v1996 = vsub.s32 0, %v1995
    %v1997 = vrot.slane %v1962, %v1996
    %v1998 = vlaneseq
    %v1999 = vshrl.u32 %v1998, 7
    %v2000 = vsub.s32 0, %v1999
    %v2001 = vrot.slane %v1966, %v2000
    %v2002 = vmul.f32 %v129, %v1977
    %v2003 = vmul.f32 %v129, %v1981
    %v2004 = vmul.f32 %v129, %v1985
    %v2005 = vmul.f32 %v129, %v1989
    %v2006 = vmul.f32 %v129, %v1993
    %v2007 = vmul.f32 %v129, %v1997
    %v2008 = vmul.f32 %v129, %v2001
    %v2009 = vadd.f32 %v58, %v2002
    %v2010 = vadd.f32 %v58, %v2003
    %v2011 = vadd.f32 %v58, %v2004
    %v2012 = vadd.f32 %v58, %v2005
    %v2013 = vadd.f32 %v58, %v2006
    %v2014 = vadd.f32 %v58, %v2007
    %v2015 = vadd.f32 %v58, %v2008
    %v2016 = vmul.f32 %v147, %v1977
    %v2017 = vmul.f32 %v147, %v1981
    %v2018 = vmul.f32 %v147, %v1985
    %v2019 = vmul.f32 %v147, %v1989
    %v2020 = vmul.f32 %v147, %v1993
    %v2021 = vmul.f32 %v147, %v1997
    %v2022 = vmul.f32 %v147, %v2001
    %2030 = vrot.lane.b32.xlu0 %v2016, 127
    %v2031 = vpop.permute.xlu0 %2030
    %2032 = vrot.lane.b32.xlu0 %v2017, 127
    %v2033 = vpop.permute.xlu0 %2032
    %2034 = vrot.lane.b32.xlu0 %v2018, 127
    %v2035 = vpop.permute.xlu0 %2034
    %2036 = vrot.lane.b32.xlu0 %v2019, 127
    %v2037 = vpop.permute.xlu0 %2036
    %2038 = vrot.lane.b32.xlu0 %v2020, 127
    %v2039 = vpop.permute.xlu0 %2038
    %2040 = vrot.lane.b32.xlu0 %v2021, 127
    %v2041 = vpop.permute.xlu0 %2040
    %2042 = vrot.lane.b32.xlu0 %v2022, 127
    %v2043 = vpop.permute.xlu0 %2042
    %v2044 = vsel %vm177, %v2031, %v2033
    %v2045 = vsel %vm177, %v2033, %v2035
    %v2046 = vsel %vm177, %v2035, %v2037
    %v2047 = vsel %vm177, %v2037, %v2039
    %v2048 = vsel %vm177, %v2039, %v2041
    %v2049 = vsel %vm177, %v2041, %v2043
    %v2057 = vadd.f32 %v2009, %v2044
    %v2058 = vadd.f32 %v2010, %v2045
    %v2059 = vadd.f32 %v2011, %v2046
    %v2060 = vadd.f32 %v2012, %v2047
    %v2061 = vadd.f32 %v2013, %v2048
    %v2062 = vadd.f32 %v2014, %v2049
    %v2063 = vadd.f32 %v2015, %v2043
    %v2064 = vmul.f32 %v200, %v1977
    %v2065 = vmul.f32 %v200, %v1981
    %v2066 = vmul.f32 %v200, %v1985
    %v2067 = vmul.f32 %v200, %v1989
    %v2068 = vmul.f32 %v200, %v1993
    %v2069 = vmul.f32 %v200, %v1997
    %v2070 = vmul.f32 %v200, %v2001
    %2078 = vrot.lane.b32.xlu0 %v2064, 126
    %v2079 = vpop.permute.xlu0 %2078
    %2080 = vrot.lane.b32.xlu0 %v2065, 126
    %v2081 = vpop.permute.xlu0 %2080
    %2082 = vrot.lane.b32.xlu0 %v2066, 126
    %v2083 = vpop.permute.xlu0 %2082
    %2084 = vrot.lane.b32.xlu0 %v2067, 126
    %v2085 = vpop.permute.xlu0 %2084
    %2086 = vrot.lane.b32.xlu0 %v2068, 126
    %v2087 = vpop.permute.xlu0 %2086
    %2088 = vrot.lane.b32.xlu0 %v2069, 126
    %v2089 = vpop.permute.xlu0 %2088
    %2090 = vrot.lane.b32.xlu0 %v2070, 126
    %v2091 = vpop.permute.xlu0 %2090
    %v2092 = vsel %vm230, %v2079, %v2081
    %v2093 = vsel %vm230, %v2081, %v2083
    %v2094 = vsel %vm230, %v2083, %v2085
    %v2095 = vsel %vm230, %v2085, %v2087
    %v2096 = vsel %vm230, %v2087, %v2089
    %v2097 = vsel %vm230, %v2089, %v2091
    %v2105 = vadd.f32 %v2057, %v2092
    %v2106 = vadd.f32 %v2058, %v2093
    %v2107 = vadd.f32 %v2059, %v2094
    %v2108 = vadd.f32 %v2060, %v2095
    %v2109 = vadd.f32 %v2061, %v2096
    %v2110 = vadd.f32 %v2062, %v2097
    %v2111 = vadd.f32 %v2063, %v2091
    %v2112 = vmul.f32 %v253, %v1977
    %v2113 = vmul.f32 %v253, %v1981
    %v2114 = vmul.f32 %v253, %v1985
    %v2115 = vmul.f32 %v253, %v1989
    %v2116 = vmul.f32 %v253, %v1993
    %v2117 = vmul.f32 %v253, %v1997
    %v2118 = vmul.f32 %v253, %v2001
    %2126 = vrot.lane.b32.xlu0 %v2112, 98
    %v2127 = vpop.permute.xlu0 %2126
    %2128 = vrot.lane.b32.xlu0 %v2113, 98
    %v2129 = vpop.permute.xlu0 %2128
    %2130 = vrot.lane.b32.xlu0 %v2114, 98
    %v2131 = vpop.permute.xlu0 %2130
    %2132 = vrot.lane.b32.xlu0 %v2115, 98
    %v2133 = vpop.permute.xlu0 %2132
    %2134 = vrot.lane.b32.xlu0 %v2116, 98
    %v2135 = vpop.permute.xlu0 %2134
    %2136 = vrot.lane.b32.xlu0 %v2117, 98
    %v2137 = vpop.permute.xlu0 %2136
    %2138 = vrot.lane.b32.xlu0 %v2118, 98
    %v2139 = vpop.permute.xlu0 %2138
    %v2140 = vsel %vm283, %v2127, %v2129
    %v2141 = vsel %vm283, %v2129, %v2131
    %v2142 = vsel %vm283, %v2131, %v2133
    %v2143 = vsel %vm283, %v2133, %v2135
    %v2144 = vsel %vm283, %v2135, %v2137
    %v2145 = vsel %vm283, %v2137, %v2139
    %v2153 = vadd.f32 %v2105, %v2140
    %v2154 = vadd.f32 %v2106, %v2141
    %v2155 = vadd.f32 %v2107, %v2142
    %v2156 = vadd.f32 %v2108, %v2143
    %v2157 = vadd.f32 %v2109, %v2144
    %v2158 = vadd.f32 %v2110, %v2145
    %v2159 = vadd.f32 %v2111, %v2139
    %v2160 = vmul.f32 %v306, %v1977
    %v2161 = vmul.f32 %v306, %v1981
    %v2162 = vmul.f32 %v306, %v1985
    %v2163 = vmul.f32 %v306, %v1989
    %v2164 = vmul.f32 %v306, %v1993
    %v2165 = vmul.f32 %v306, %v1997
    %v2166 = vmul.f32 %v306, %v2001
    %2174 = vrot.lane.b32.xlu0 %v2160, 97
    %v2175 = vpop.permute.xlu0 %2174
    %2176 = vrot.lane.b32.xlu0 %v2161, 97
    %v2177 = vpop.permute.xlu0 %2176
    %2178 = vrot.lane.b32.xlu0 %v2162, 97
    %v2179 = vpop.permute.xlu0 %2178
    %2180 = vrot.lane.b32.xlu0 %v2163, 97
    %v2181 = vpop.permute.xlu0 %2180
    %2182 = vrot.lane.b32.xlu0 %v2164, 97
    %v2183 = vpop.permute.xlu0 %2182
    %2184 = vrot.lane.b32.xlu0 %v2165, 97
    %v2185 = vpop.permute.xlu0 %2184
    %2186 = vrot.lane.b32.xlu0 %v2166, 97
    %v2187 = vpop.permute.xlu0 %2186
    %v2188 = vsel %vm336, %v2175, %v2177
    %v2189 = vsel %vm336, %v2177, %v2179
    %v2190 = vsel %vm336, %v2179, %v2181
    %v2191 = vsel %vm336, %v2181, %v2183
    %v2192 = vsel %vm336, %v2183, %v2185
    %v2193 = vsel %vm336, %v2185, %v2187
    %v2201 = vadd.f32 %v2153, %v2188
    %v2202 = vadd.f32 %v2154, %v2189
    %v2203 = vadd.f32 %v2155, %v2190
    %v2204 = vadd.f32 %v2156, %v2191
    %v2205 = vadd.f32 %v2157, %v2192
    %v2206 = vadd.f32 %v2158, %v2193
    %v2207 = vadd.f32 %v2159, %v2187
    %v2208 = vmul.f32 %v359, %v1977
    %v2209 = vmul.f32 %v359, %v1981
    %v2210 = vmul.f32 %v359, %v1985
    %v2211 = vmul.f32 %v359, %v1989
    %v2212 = vmul.f32 %v359, %v1993
    %v2213 = vmul.f32 %v359, %v1997
    %v2214 = vmul.f32 %v359, %v2001
    %2222 = vrot.lane.b32.xlu0 %v2208, 96
    %v2223 = vpop.permute.xlu0 %2222
    %2224 = vrot.lane.b32.xlu0 %v2209, 96
    %v2225 = vpop.permute.xlu0 %2224
    %2226 = vrot.lane.b32.xlu0 %v2210, 96
    %v2227 = vpop.permute.xlu0 %2226
    %2228 = vrot.lane.b32.xlu0 %v2211, 96
    %v2229 = vpop.permute.xlu0 %2228
    %2230 = vrot.lane.b32.xlu0 %v2212, 96
    %v2231 = vpop.permute.xlu0 %2230
    %2232 = vrot.lane.b32.xlu0 %v2213, 96
    %v2233 = vpop.permute.xlu0 %2232
    %2234 = vrot.lane.b32.xlu0 %v2214, 96
    %v2235 = vpop.permute.xlu0 %2234
    %v2236 = vsel %vm389, %v2223, %v2225
    %v2237 = vsel %vm389, %v2225, %v2227
    %v2238 = vsel %vm389, %v2227, %v2229
    %v2239 = vsel %vm389, %v2229, %v2231
    %v2240 = vsel %vm389, %v2231, %v2233
    %v2241 = vsel %vm389, %v2233, %v2235
    %v2249 = vadd.f32 %v2201, %v2236
    %v2250 = vadd.f32 %v2202, %v2237
    %v2251 = vadd.f32 %v2203, %v2238
    %v2252 = vadd.f32 %v2204, %v2239
    %v2253 = vadd.f32 %v2205, %v2240
    %v2254 = vadd.f32 %v2206, %v2241
    %v2255 = vadd.f32 %v2207, %v2235
    %v2256 = vlaneseq
    %v2257 = vshrl.u32 %v2256, 7
    %v2258 = vsub.s32 6, %v2257
    %v2259 = vrot.slane %v1936, %v2258
    %v2261 = vlaneseq
    %v2262 = vshrl.u32 %v2261, 7
    %v2263 = vsub.s32 0, %v2262
    %v2264 = vrot.slane %v2259, %v2263
    %v2265 = vmul.f32 %v421, %v1977
    %v2266 = vmul.f32 %v421, %v1981
    %v2267 = vmul.f32 %v421, %v1985
    %v2268 = vmul.f32 %v421, %v1989
    %v2269 = vmul.f32 %v421, %v1993
    %v2270 = vmul.f32 %v421, %v1997
    %v2271 = vmul.f32 %v421, %v2001
    %v2272 = vmul.f32 %v421, %v2264
    %2281 = vrot.lane.b32.xlu0 %v2265, 68
    %v2282 = vpop.permute.xlu0 %2281
    %2283 = vrot.lane.b32.xlu0 %v2266, 68
    %v2284 = vpop.permute.xlu0 %2283
    %2285 = vrot.lane.b32.xlu0 %v2267, 68
    %v2286 = vpop.permute.xlu0 %2285
    %2287 = vrot.lane.b32.xlu0 %v2268, 68
    %v2288 = vpop.permute.xlu0 %2287
    %2289 = vrot.lane.b32.xlu0 %v2269, 68
    %v2290 = vpop.permute.xlu0 %2289
    %2291 = vrot.lane.b32.xlu0 %v2270, 68
    %v2292 = vpop.permute.xlu0 %2291
    %2293 = vrot.lane.b32.xlu0 %v2271, 68
    %v2294 = vpop.permute.xlu0 %2293
    %2295 = vrot.lane.b32.xlu0 %v2272, 68
    %v2296 = vpop.permute.xlu0 %2295
    %v2297 = vsel %vm455, %v2282, %v2284
    %v2298 = vsel %vm455, %v2284, %v2286
    %v2299 = vsel %vm455, %v2286, %v2288
    %v2300 = vsel %vm455, %v2288, %v2290
    %v2301 = vsel %vm455, %v2290, %v2292
    %v2302 = vsel %vm455, %v2292, %v2294
    %v2303 = vsel %vm455, %v2294, %v2296
    %v2311 = vadd.f32 %v2249, %v2297
    %v2312 = vadd.f32 %v2250, %v2298
    %v2313 = vadd.f32 %v2251, %v2299
    %v2314 = vadd.f32 %v2252, %v2300
    %v2315 = vadd.f32 %v2253, %v2301
    %v2316 = vadd.f32 %v2254, %v2302
    %v2317 = vadd.f32 %v2255, %v2303
    %v2318 = vmul.f32 %v479, %v1977
    %v2319 = vmul.f32 %v479, %v1981
    %v2320 = vmul.f32 %v479, %v1985
    %v2321 = vmul.f32 %v479, %v1989
    %v2322 = vmul.f32 %v479, %v1993
    %v2323 = vmul.f32 %v479, %v1997
    %v2324 = vmul.f32 %v479, %v2001
    %v2325 = vmul.f32 %v479, %v2264
    %2334 = vrot.lane.b32.xlu0 %v2318, 67
    %v2335 = vpop.permute.xlu0 %2334
    %2336 = vrot.lane.b32.xlu0 %v2319, 67
    %v2337 = vpop.permute.xlu0 %2336
    %2338 = vrot.lane.b32.xlu0 %v2320, 67
    %v2339 = vpop.permute.xlu0 %2338
    %2340 = vrot.lane.b32.xlu0 %v2321, 67
    %v2341 = vpop.permute.xlu0 %2340
    %2342 = vrot.lane.b32.xlu0 %v2322, 67
    %v2343 = vpop.permute.xlu0 %2342
    %2344 = vrot.lane.b32.xlu0 %v2323, 67
    %v2345 = vpop.permute.xlu0 %2344
    %2346 = vrot.lane.b32.xlu0 %v2324, 67
    %v2347 = vpop.permute.xlu0 %2346
    %2348 = vrot.lane.b32.xlu0 %v2325, 67
    %v2349 = vpop.permute.xlu0 %2348
    %v2350 = vsel %vm513, %v2335, %v2337
    %v2351 = vsel %vm513, %v2337, %v2339
    %v2352 = vsel %vm513, %v2339, %v2341
    %v2353 = vsel %vm513, %v2341, %v2343
    %v2354 = vsel %vm513, %v2343, %v2345
    %v2355 = vsel %vm513, %v2345, %v2347
    %v2356 = vsel %vm513, %v2347, %v2349
    %v2364 = vadd.f32 %v2311, %v2350
    %v2365 = vadd.f32 %v2312, %v2351
    %v2366 = vadd.f32 %v2313, %v2352
    %v2367 = vadd.f32 %v2314, %v2353
    %v2368 = vadd.f32 %v2315, %v2354
    %v2369 = vadd.f32 %v2316, %v2355
    %v2370 = vadd.f32 %v2317, %v2356
    %v2371 = vmul.f32 %v537, %v1977
    %v2372 = vmul.f32 %v537, %v1981
    %v2373 = vmul.f32 %v537, %v1985
    %v2374 = vmul.f32 %v537, %v1989
    %v2375 = vmul.f32 %v537, %v1993
    %v2376 = vmul.f32 %v537, %v1997
    %v2377 = vmul.f32 %v537, %v2001
    %v2378 = vmul.f32 %v537, %v2264
    %2387 = vrot.lane.b32.xlu0 %v2371, 66
    %v2388 = vpop.permute.xlu0 %2387
    %2389 = vrot.lane.b32.xlu0 %v2372, 66
    %v2390 = vpop.permute.xlu0 %2389
    %2391 = vrot.lane.b32.xlu0 %v2373, 66
    %v2392 = vpop.permute.xlu0 %2391
    %2393 = vrot.lane.b32.xlu0 %v2374, 66
    %v2394 = vpop.permute.xlu0 %2393
    %2395 = vrot.lane.b32.xlu0 %v2375, 66
    %v2396 = vpop.permute.xlu0 %2395
    %2397 = vrot.lane.b32.xlu0 %v2376, 66
    %v2398 = vpop.permute.xlu0 %2397
    %2399 = vrot.lane.b32.xlu0 %v2377, 66
    %v2400 = vpop.permute.xlu0 %2399
    %2401 = vrot.lane.b32.xlu0 %v2378, 66
    %v2402 = vpop.permute.xlu0 %2401
    %v2403 = vsel %vm571, %v2388, %v2390
    %v2404 = vsel %vm571, %v2390, %v2392
    %v2405 = vsel %vm571, %v2392, %v2394
    %v2406 = vsel %vm571, %v2394, %v2396
    %v2407 = vsel %vm571, %v2396, %v2398
    %v2408 = vsel %vm571, %v2398, %v2400
    %v2409 = vsel %vm571, %v2400, %v2402
    %v2417 = vadd.f32 %v2364, %v2403
    %v2418 = vadd.f32 %v2365, %v2404
    %v2419 = vadd.f32 %v2366, %v2405
    %v2420 = vadd.f32 %v2367, %v2406
    %v2421 = vadd.f32 %v2368, %v2407
    %v2422 = vadd.f32 %v2369, %v2408
    %v2423 = vadd.f32 %v2370, %v2409
    %v2424 = vmax.f32 %v2417, 0.0
    %v2425 = vmax.f32 %v2418, 0.0
    %v2426 = vmax.f32 %v2419, 0.0
    %v2427 = vmax.f32 %v2420, 0.0
    %v2428 = vmax.f32 %v2421, 0.0
    %v2429 = vmax.f32 %v2422, 0.0
    %v2430 = vmax.f32 %v2423, 0.0
    %2438 = vrot.lane.b32.xlu0 %v2424, 127
    %v2439 = vpop.permute.xlu0 %2438
    %2440 = vrot.lane.b32.xlu0 %v2425, 127
    %v2441 = vpop.permute.xlu0 %2440
    %2442 = vrot.lane.b32.xlu0 %v2426, 127
    %v2443 = vpop.permute.xlu0 %2442
    %2444 = vrot.lane.b32.xlu0 %v2427, 127
    %v2445 = vpop.permute.xlu0 %2444
    %2446 = vrot.lane.b32.xlu0 %v2428, 127
    %v2447 = vpop.permute.xlu0 %2446
    %2448 = vrot.lane.b32.xlu0 %v2429, 127
    %v2449 = vpop.permute.xlu0 %2448
    %2450 = vrot.lane.b32.xlu0 %v2430, 127
    %v2451 = vpop.permute.xlu0 %2450
    %v2452 = vsel %vm177, %v2439, %v2441
    %v2453 = vsel %vm177, %v2441, %v2443
    %v2454 = vsel %vm177, %v2443, %v2445
    %v2455 = vsel %vm177, %v2445, %v2447
    %v2456 = vsel %vm177, %v2447, %v2449
    %v2457 = vsel %vm177, %v2449, %v2451
    %v2465 = vmax.f32 %v2424, %v2452
    %v2466 = vmax.f32 %v2425, %v2453
    %v2467 = vmax.f32 %v2426, %v2454
    %v2468 = vmax.f32 %v2427, %v2455
    %v2469 = vmax.f32 %v2428, %v2456
    %v2470 = vmax.f32 %v2429, %v2457
    %v2471 = vmax.f32 %v2430, %v2451
    %2479 = vrot.lane.b32.xlu0 %v2465, 98
    %v2480 = vpop.permute.xlu0 %2479
    %2481 = vrot.lane.b32.xlu0 %v2466, 98
    %v2482 = vpop.permute.xlu0 %2481
    %2483 = vrot.lane.b32.xlu0 %v2467, 98
    %v2484 = vpop.permute.xlu0 %2483
    %2485 = vrot.lane.b32.xlu0 %v2468, 98
    %v2486 = vpop.permute.xlu0 %2485
    %2487 = vrot.lane.b32.xlu0 %v2469, 98
    %v2488 = vpop.permute.xlu0 %2487
    %2489 = vrot.lane.b32.xlu0 %v2470, 98
    %v2490 = vpop.permute.xlu0 %2489
    %2491 = vrot.lane.b32.xlu0 %v2471, 98
    %v2492 = vpop.permute.xlu0 %2491
    %v2493 = vsel %vm283, %v2480, %v2482
    %v2494 = vsel %vm283, %v2482, %v2484
    %v2495 = vsel %vm283, %v2484, %v2486
    %v2496 = vsel %vm283, %v2486, %v2488
    %v2497 = vsel %vm283, %v2488, %v2490
    %v2498 = vsel %vm283, %v2490, %v2492
    %v2506 = vmax.f32 %v2465, %v2493
    %v2507 = vmax.f32 %v2466, %v2494
    %v2508 = vmax.f32 %v2467, %v2495
    %v2509 = vmax.f32 %v2468, %v2496
    %v2510 = vmax.f32 %v2469, %v2497
    %v2511 = vmax.f32 %v2470, %v2498
    %v2512 = vmax.f32 %v2471, %v2492
    %v2513 = vpack.c.bf16 %v2506, %v2506
    %v2514 = vpack.c.bf16 %v2507, %v2507
    %v2515 = vpack.c.bf16 %v2508, %v2508
    %v2516 = vpack.c.bf16 %v2509, %v2509
    %v2517 = vpack.c.bf16 %v2510, %v2510
    %v2518 = vpack.c.bf16 %v2511, %v2511
    %v2519 = vpack.c.bf16 %v2512, %v2512
    %v2521 = vsel %vm1295, %v2519, 0
    %2523 = vmatprep.subr.bf16.mxu0 %v1094
    %2524 = vmatpush1.bf16.msra.mxu0 %v1093
    %2525 = vmatprep.subr.bf16.mxu0 %v1096
    %2526 = vmatpush1.bf16.msra.mxu0 %v1095
    %2527 = vmatprep.subr.bf16.mxu0 %v1098
    %2528 = vmatpush1.bf16.msra.mxu0 %v1097
    %2529 = vmatprep.subr.bf16.mxu0 %v1100
    %2530 = vmatpush1.bf16.msra.mxu0 %v1099
    %2531 = vmatprep.subr.bf16.mxu0 %v1102
    %2532 = vmatpush1.bf16.msra.mxu0 %v1101
    %2533 = vmatprep.subr.bf16.mxu0 %v1104
    %2534 = vmatpush1.bf16.msra.mxu0 %v1103
    %2535 = vmatprep.subr.bf16.mxu0 %v1106
    %2536 = vmatpush1.bf16.msra.mxu0 %v1105
    %2537 = vmatprep.subr.bf16.mxu0 %v1108
    %2538 = vmatpush1.bf16.msra.mxu0 %v1107
    %2539 = vmatprep.subr.bf16.mxu0 %v1110
    %2540 = vmatpush1.bf16.msra.mxu0 %v1109
    %2541 = vmatprep.subr.bf16.mxu0 %v1112
    %2542 = vmatpush1.bf16.msra.mxu0 %v1111
    %2543 = vmatprep.subr.bf16.mxu0 %v1114
    %2544 = vmatpush1.bf16.msra.mxu0 %v1113
    %2545 = vmatprep.subr.bf16.mxu0 %v1116
    %2546 = vmatpush1.bf16.msra.mxu0 %v1115
    %2547 = vmatprep.subr.bf16.mxu0 %v1118
    %2548 = vmatpush1.bf16.msra.mxu0 %v1117
    %2549 = vmatprep.subr.bf16.mxu0 %v1120
    %2550 = vmatpush1.bf16.msra.mxu0 %v1119
    %2551 = vmatprep.subr.bf16.mxu0 %v1122
    %2552 = vmatpush1.bf16.msra.mxu0 %v1121
    %2553 = vmatprep.subr.bf16.mxu0 %v1124
    %2554 = vmatpush1.bf16.msra.mxu0 %v1123
    %2555 = vmatprep.mubr.bf16.mxu0 %v2514
    %2556 = vmatmul.mubr.bf16.gmra.mrb[0].mxu0 %v2513
    %v2557 = vpop.f32.mrb[0].mxu0
    %v2558 = vadd.f32 0.0, %v2557
    %v2559 = vpop.f32.mrb[0].mxu0
    %v2560 = vadd.f32 0.0, %v2559
    %v2561 = vpop.f32.mrb[0].mxu0
    %v2562 = vpop.f32.mrb[0].mxu0
    %2563 = vdwg.mxu0
    %2564 = vmatprep.subr.bf16.mxu0 %v1126
    %2565 = vmatpush1.bf16.msra.mxu0 %v1125
    %2566 = vmatprep.subr.bf16.mxu0 %v1128
    %2567 = vmatpush1.bf16.msra.mxu0 %v1127
    %2568 = vmatprep.subr.bf16.mxu0 %v1130
    %2569 = vmatpush1.bf16.msra.mxu0 %v1129
    %2570 = vmatprep.subr.bf16.mxu0 %v1132
    %2571 = vmatpush1.bf16.msra.mxu0 %v1131
    %2572 = vmatprep.subr.bf16.mxu0 %v1134
    %2573 = vmatpush1.bf16.msra.mxu0 %v1133
    %2574 = vmatprep.subr.bf16.mxu0 %v1136
    %2575 = vmatpush1.bf16.msra.mxu0 %v1135
    %2576 = vmatprep.subr.bf16.mxu0 %v1138
    %2577 = vmatpush1.bf16.msra.mxu0 %v1137
    %2578 = vmatprep.subr.bf16.mxu0 %v1140
    %2579 = vmatpush1.bf16.msra.mxu0 %v1139
    %2580 = vmatprep.subr.bf16.mxu0 %v1142
    %2581 = vmatpush1.bf16.msra.mxu0 %v1141
    %2582 = vmatprep.subr.bf16.mxu0 %v1144
    %2583 = vmatpush1.bf16.msra.mxu0 %v1143
    %2584 = vmatprep.subr.bf16.mxu0 %v1146
    %2585 = vmatpush1.bf16.msra.mxu0 %v1145
    %2586 = vmatprep.subr.bf16.mxu0 %v1148
    %2587 = vmatpush1.bf16.msra.mxu0 %v1147
    %2588 = vmatprep.subr.bf16.mxu0 %v1150
    %2589 = vmatpush1.bf16.msra.mxu0 %v1149
    %2590 = vmatprep.subr.bf16.mxu0 %v1152
    %2591 = vmatpush1.bf16.msra.mxu0 %v1151
    %2592 = vmatprep.subr.bf16.mxu0 %v1154
    %2593 = vmatpush1.bf16.msra.mxu0 %v1153
    %2594 = vmatprep.subr.bf16.mxu0 %v1156
    %2595 = vmatpush1.bf16.msra.mxu0 %v1155
    %2596 = vmatprep.mubr.bf16.mxu0 %v2516
    %2597 = vmatmul.mubr.bf16.gmra.mrb[0].mxu0 %v2515
    %v2598 = vpop.f32.mrb[0].mxu0
    %v2599 = vadd.f32 %v2558, %v2598
    %v2600 = vpop.f32.mrb[0].mxu0
    %v2601 = vadd.f32 %v2560, %v2600
    %v2602 = vpop.f32.mrb[0].mxu0
    %v2603 = vpop.f32.mrb[0].mxu0
    %2604 = vdwg.mxu0
    %2605 = vmatprep.subr.bf16.mxu0 %v1158
    %2606 = vmatpush1.bf16.msra.mxu0 %v1157
    %2607 = vmatprep.subr.bf16.mxu0 %v1160
    %2608 = vmatpush1.bf16.msra.mxu0 %v1159
    %2609 = vmatprep.subr.bf16.mxu0 %v1162
    %2610 = vmatpush1.bf16.msra.mxu0 %v1161
    %2611 = vmatprep.subr.bf16.mxu0 %v1164
    %2612 = vmatpush1.bf16.msra.mxu0 %v1163
    %2613 = vmatprep.subr.bf16.mxu0 %v1166
    %2614 = vmatpush1.bf16.msra.mxu0 %v1165
    %2615 = vmatprep.subr.bf16.mxu0 %v1168
    %2616 = vmatpush1.bf16.msra.mxu0 %v1167
    %2617 = vmatprep.subr.bf16.mxu0 %v1170
    %2618 = vmatpush1.bf16.msra.mxu0 %v1169
    %2619 = vmatprep.subr.bf16.mxu0 %v1172
    %2620 = vmatpush1.bf16.msra.mxu0 %v1171
    %2621 = vmatprep.subr.bf16.mxu0 %v1174
    %2622 = vmatpush1.bf16.msra.mxu0 %v1173
    %2623 = vmatprep.subr.bf16.mxu0 %v1176
    %2624 = vmatpush1.bf16.msra.mxu0 %v1175
    %2625 = vmatprep.subr.bf16.mxu0 %v1178
    %2626 = vmatpush1.bf16.msra.mxu0 %v1177
    %2627 = vmatprep.subr.bf16.mxu0 %v1180
    %2628 = vmatpush1.bf16.msra.mxu0 %v1179
    %2629 = vmatprep.subr.bf16.mxu0 %v1182
    %2630 = vmatpush1.bf16.msra.mxu0 %v1181
    %2631 = vmatprep.subr.bf16.mxu0 %v1184
    %2632 = vmatpush1.bf16.msra.mxu0 %v1183
    %2633 = vmatprep.subr.bf16.mxu0 %v1186
    %2634 = vmatpush1.bf16.msra.mxu0 %v1185
    %2635 = vmatprep.subr.bf16.mxu0 %v1188
    %2636 = vmatpush1.bf16.msra.mxu0 %v1187
    %2637 = vmatprep.mubr.bf16.mxu0 %v2518
    %2638 = vmatmul.mubr.bf16.gmra.mrb[0].mxu0 %v2517
    %v2639 = vpop.f32.mrb[0].mxu0
    %v2640 = vadd.f32 %v2599, %v2639
    %v2641 = vpop.f32.mrb[0].mxu0
    %v2642 = vadd.f32 %v2601, %v2641
    %v2643 = vpop.f32.mrb[0].mxu0
    %v2644 = vpop.f32.mrb[0].mxu0
    %2645 = vdwg.mxu0
    %2646 = vmatprep.subr.bf16.mxu0 %v1190
    %2647 = vmatpush1.bf16.msra.mxu0 %v1189
    %2648 = vmatprep.subr.bf16.mxu0 %v1192
    %2649 = vmatpush1.bf16.msra.mxu0 %v1191
    %2650 = vmatprep.subr.bf16.mxu0 %v1307
    %2651 = vmatpush1.bf16.msra.mxu0 %v1304
    %2652 = vmatprep.subr.bf16.mxu0 0
    %2653 = vmatpush1.bf16.msra.mxu0 0
    %2654 = vmatprep.subr.bf16.mxu0 0
    %2655 = vmatpush1.bf16.msra.mxu0 0
    %2656 = vmatprep.subr.bf16.mxu0 0
    %2657 = vmatpush1.bf16.msra.mxu0 0
    %2658 = vmatprep.subr.bf16.mxu0 0
    %2659 = vmatpush1.bf16.msra.mxu0 0
    %2660 = vmatprep.subr.bf16.mxu0 0
    %2661 = vmatpush1.bf16.msra.mxu0 0
    %2662 = vmatprep.subr.bf16.mxu0 0
    %2663 = vmatpush1.bf16.msra.mxu0 0
    %2664 = vmatprep.subr.bf16.mxu0 0
    %2665 = vmatpush1.bf16.msra.mxu0 0
    %2666 = vmatprep.subr.bf16.mxu0 0
    %2667 = vmatpush1.bf16.msra.mxu0 0
    %2668 = vmatprep.subr.bf16.mxu0 0
    %2669 = vmatpush1.bf16.msra.mxu0 0
    %2670 = vmatprep.subr.bf16.mxu0 0
    %2671 = vmatpush1.bf16.msra.mxu0 0
    %2672 = vmatprep.subr.bf16.mxu0 0
    %2673 = vmatpush1.bf16.msra.mxu0 0
    %2674 = vmatprep.subr.bf16.mxu0 0
    %2675 = vmatpush1.bf16.msra.mxu0 0
    %2676 = vmatprep.subr.bf16.mxu0 0
    %2677 = vmatpush1.bf16.msra.mxu0 0
    %2678 = vmatprep.mubr.bf16.mxu0 0
    %2679 = vmatmul.mubr.bf16.gmra.mrb[0].mxu0 %v2521
    %v2680 = vpop.f32.mrb[0].mxu0
    %v2681 = vadd.f32 %v2640, %v2680
    %v2682 = vpop.f32.mrb[0].mxu0
    %v2683 = vadd.f32 %v2642, %v2682
    %v2684 = vpop.f32.mrb[0].mxu0
    %v2685 = vpop.f32.mrb[0].mxu0
    %2686 = vdwg.mxu0
    %v2687 = vpack.c.bf16 %v2681, %v2681
    %v2688 = vpack.c.bf16 %v2683, %v2683
    %v2691 = vrot.slane %v2687, 4
    %v2692 = vrot.slane %v2688, 4
    %2693 = vrot.lane.b32.xlu0 %v2691, 127
    %v2694 = vpop.permute.xlu0 %2693
    %2695 = vrot.lane.b32.xlu0 %v2692, 127
    %v2696 = vpop.permute.xlu0 %2695
    %v2697 = vsel %vm1483, %v2694, %v2696
    %2698 = vrot.lane.b32.xlu0 %v2687, 126
    %v2699 = vpop.permute.xlu0 %2698
    %2700 = vrot.lane.b32.xlu0 %v2688, 126
    %v2701 = vpop.permute.xlu0 %2700
    %v2702 = vsel %vm1489, %v2699, %v2701
    %2703 = vrot.lane.b32.xlu0 %v2691, 112
    %v2704 = vpop.permute.xlu0 %2703
    %2705 = vrot.lane.b32.xlu0 %v2692, 112
    %v2706 = vpop.permute.xlu0 %2705
    %v2707 = vsel %vm1495, %v2704, %v2706
    %2708 = vrot.lane.b32.xlu0 %v2687, 111
    %v2709 = vpop.permute.xlu0 %2708
    %2710 = vrot.lane.b32.xlu0 %v2688, 111
    %v2711 = vpop.permute.xlu0 %2710
    %v2712 = vsel %vm1501, %v2709, %v2711
    %2713 = vrot.lane.b32.xlu0 %v2691, 110
    %v2714 = vpop.permute.xlu0 %2713
    %2715 = vrot.lane.b32.xlu0 %v2692, 110
    %v2716 = vpop.permute.xlu0 %2715
    %v2717 = vsel %vm1507, %v2714, %v2716
    %2718 = vrot.lane.b32.xlu0 %v2687, 96
    %v2719 = vpop.permute.xlu0 %2718
    %2720 = vrot.lane.b32.xlu0 %v2688, 96
    %v2721 = vpop.permute.xlu0 %2720
    %v2722 = vsel %vm1513, %v2719, %v2721
    %2723 = vrot.lane.b32.xlu0 %v2691, 95
    %v2724 = vpop.permute.xlu0 %2723
    %2725 = vrot.lane.b32.xlu0 %v2692, 95
    %v2726 = vpop.permute.xlu0 %2725
    %v2727 = vsel %vm1519, %v2724, %v2726
    %2728 = vrot.lane.b32.xlu0 %v2687, 94
    %v2729 = vpop.permute.xlu0 %2728
    %2730 = vrot.lane.b32.xlu0 %v2688, 94
    %v2731 = vpop.permute.xlu0 %2730
    %v2732 = vsel %vm1525, %v2729, %v2731
    %v2735 = vsel %vm1300, %v2687, %v2697
    %v2739 = vsel %vm1300, %v2688, %v2696
    %v2743 = vsel %vm1300, %v2702, %v2707
    %v2747 = vsel %vm1300, %v2701, %v2706
    %v2751 = vsel %vm1300, %v2712, %v2717
    %v2755 = vsel %vm1300, %v2711, %v2716
    %v2759 = vsel %vm1300, %v2722, %v2727
    %v2763 = vsel %vm1300, %v2721, %v2726
    %v2766 = vsel %vm1300, %v2732, 0
    %v2769 = vsel %vm1300, %v2731, 0
    %2771 = vmatprep.subr.bf16.mxu0 %v2739
    %2772 = vmatpush1.bf16.msra.mxu0 %v2735
    %2773 = vmatprep.subr.bf16.mxu0 %v2747
    %2774 = vmatpush1.bf16.msra.mxu0 %v2743
    %2775 = vmatprep.subr.bf16.mxu0 %v2755
    %2776 = vmatpush1.bf16.msra.mxu0 %v2751
    %2777 = vmatprep.subr.bf16.mxu0 %v2763
    %2778 = vmatpush1.bf16.msra.mxu0 %v2759
    %2779 = vmatprep.subr.bf16.mxu0 %v2769
    %2780 = vmatpush1.bf16.msra.mxu0 %v2766
    %2781 = vmatprep.subr.bf16.mxu0 0
    %2782 = vmatpush1.bf16.msra.mxu0 0
    %2783 = vmatprep.subr.bf16.mxu0 0
    %2784 = vmatpush1.bf16.msra.mxu0 0
    %2785 = vmatprep.subr.bf16.mxu0 0
    %2786 = vmatpush1.bf16.msra.mxu0 0
    %2787 = vmatprep.subr.bf16.mxu0 0
    %2788 = vmatpush1.bf16.msra.mxu0 0
    %2789 = vmatprep.subr.bf16.mxu0 0
    %2790 = vmatpush1.bf16.msra.mxu0 0
    %2791 = vmatprep.subr.bf16.mxu0 0
    %2792 = vmatpush1.bf16.msra.mxu0 0
    %2793 = vmatprep.subr.bf16.mxu0 0
    %2794 = vmatpush1.bf16.msra.mxu0 0
    %2795 = vmatprep.subr.bf16.mxu0 0
    %2796 = vmatpush1.bf16.msra.mxu0 0
    %2797 = vmatprep.subr.bf16.mxu0 0
    %2798 = vmatpush1.bf16.msra.mxu0 0
    %2799 = vmatprep.subr.bf16.mxu0 0
    %2800 = vmatpush1.bf16.msra.mxu0 0
    %2801 = vmatprep.subr.bf16.mxu0 0
    %2802 = vmatpush1.bf16.msra.mxu0 0
    %2803 = vmatprep.mubr.bf16.mxu0 0
    %2804 = vmatmul.mubr.bf16.gmra.mrb[0].mxu0 %v1580
    %v2805 = vpop.f32.mrb[0].mxu0
    %v2806 = vadd.f32 %v1566, %v2805
    %v2807 = vpop.f32.mrb[0].mxu0
    %v2808 = vadd.f32 %v1566, %v2807
    %v2809 = vpop.f32.mrb[0].mxu0
    %v2810 = vadd.f32 %v1571, %v2809
    %v2811 = vpop.f32.mrb[0].mxu0
    %v2812 = vadd.f32 %v1571, %v2811
    %2813 = vdwg.mxu0
    %v2814 = vmax.f32 %v2806, 0.0
    %v2815 = vmax.f32 %v2808, 0.0
    %v2816 = vmax.f32 %v2810, 0.0
    %v2817 = vmax.f32 %v2812, 0.0
    %2822 = vrot.lane.b32.xlu0 %v2814, 127
    %v2823 = vpop.permute.xlu0 %2822
    %2824 = vrot.lane.b32.xlu0 %v2815, 127
    %v2825 = vpop.permute.xlu0 %2824
    %2826 = vrot.lane.b32.xlu0 %v2816, 127
    %v2827 = vpop.permute.xlu0 %2826
    %2828 = vrot.lane.b32.xlu0 %v2817, 127
    %v2829 = vpop.permute.xlu0 %2828
    %v2830 = vsel %vm177, %v2823, %v2825
    %v2831 = vsel %vm177, %v2827, %v2829
    %v2836 = vmax.f32 %v2814, %v2830
    %v2837 = vmax.f32 %v2815, %v2825
    %v2838 = vmax.f32 %v2816, %v2831
    %v2839 = vmax.f32 %v2817, %v2829
    %2844 = vrot.lane.b32.xlu0 %v2836, 112
    %v2845 = vpop.permute.xlu0 %2844
    %2846 = vrot.lane.b32.xlu0 %v2837, 112
    %v2847 = vpop.permute.xlu0 %2846
    %2848 = vrot.lane.b32.xlu0 %v2838, 112
    %v2849 = vpop.permute.xlu0 %2848
    %2850 = vrot.lane.b32.xlu0 %v2839, 112
    %v2851 = vpop.permute.xlu0 %2850
    %v2852 = vsel %vm1669, %v2845, %v2847
    %v2853 = vsel %vm1669, %v2849, %v2851
    %v2858 = vmax.f32 %v2836, %v2852
    %v2859 = vmax.f32 %v2837, %v2847
    %v2860 = vmax.f32 %v2838, %v2853
    %v2861 = vmax.f32 %v2839, %v2851
    %v2862 = vpack.c.bf16 %v2860, %v2858
    %v2863 = vpack.c.bf16 %v2861, %v2859
    %v2865 = vsel %vm1785, %v2863, 0
    %2867 = vmatprep.subr.bf16.mxu0 0
    %2868 = vmatpush1.bf16.msra.mxu0 %v1760
    %2869 = vmatprep.subr.bf16.mxu0 0
    %2870 = vmatpush1.bf16.msra.mxu0 %v1761
    %2871 = vmatprep.subr.bf16.mxu0 0
    %2872 = vmatpush1.bf16.msra.mxu0 %v1762
    %2873 = vmatprep.subr.bf16.mxu0 0
    %2874 = vmatpush1.bf16.msra.mxu0 %v1763
    %2875 = vmatprep.subr.bf16.mxu0 0
    %2876 = vmatpush1.bf16.msra.mxu0 %v1764
    %2877 = vmatprep.subr.bf16.mxu0 0
    %2878 = vmatpush1.bf16.msra.mxu0 %v1765
    %2879 = vmatprep.subr.bf16.mxu0 0
    %2880 = vmatpush1.bf16.msra.mxu0 %v1766
    %2881 = vmatprep.subr.bf16.mxu0 0
    %2882 = vmatpush1.bf16.msra.mxu0 %v1767
    %2883 = vmatprep.subr.bf16.mxu0 0
    %2884 = vmatpush1.bf16.msra.mxu0 %v1768
    %2885 = vmatprep.subr.bf16.mxu0 0
    %2886 = vmatpush1.bf16.msra.mxu0 %v1769
    %2887 = vmatprep.subr.bf16.mxu0 0
    %2888 = vmatpush1.bf16.msra.mxu0 %v1770
    %2889 = vmatprep.subr.bf16.mxu0 0
    %2890 = vmatpush1.bf16.msra.mxu0 %v1771
    %2891 = vmatprep.subr.bf16.mxu0 0
    %2892 = vmatpush1.bf16.msra.mxu0 %v1794
    %2893 = vmatprep.subr.bf16.mxu0 0
    %2894 = vmatpush1.bf16.msra.mxu0 0
    %2895 = vmatprep.subr.bf16.mxu0 0
    %2896 = vmatpush1.bf16.msra.mxu0 0
    %2897 = vmatprep.subr.bf16.mxu0 0
    %2898 = vmatpush1.bf16.msra.mxu0 0
    %2899 = vmatprep.mubr.bf16.mxu0 %v2865
    %2900 = vmatmul.mubr.bf16.gmra.mrb[0].mxu0 %v2862
    %v2901 = vpop.f32.mrb[0].mxu0
    %v2902 = vadd.f32 0.0, %v2901
    %v2903 = vpop.f32.mrb[0].mxu0
    %v2904 = vpop.f32.mrb[0].mxu0
    %v2905 = vadd.f32 0.0, %v2904
    %v2906 = vpop.f32.mrb[0].mxu0
    %2907 = vdwg.mxu0
    %v2908 = vmul.f32 %v2902, %v1837
    %v2909 = vmul.f32 %v2905, %v1838
    %v2910 = vsel %vm1841, %v2908, 0.0
    %v2911 = vsel %vm1841, %v2909, 0.0
    %v2912 = vadd.f32 %v2910, %v2911
    %v2913 = vrot.slane %v2912, 4
    %v2914 = vadd.f32 %v2912, %v2913
    %v2915 = vrot.slane %v2914, 2
    %v2916 = vadd.f32 %v2914, %v2915
    %v2917 = vrot.slane %v2916, 1
    %v2918 = vadd.f32 %v2916, %v2917
    %v2920 = vsel %vm1841, %v2918, 0
    %2922 = vmatprep.subr.mxu0 0.0
    %2923 = vmatpush1.msra.mxu0 %v1851
    %2924 = vmatprep.subr.mxu0 0.0
    %2925 = vmatpush1.msra.mxu0 %v1852
    %2926 = vmatprep.subr.mxu0 0.0
    %2927 = vmatpush1.msra.mxu0 %v1853
    %2928 = vmatprep.subr.mxu0 0.0
    %2929 = vmatpush1.msra.mxu0 %v1854
    %2930 = vmatprep.subr.mxu0 0.0
    %2931 = vmatpush1.msra.mxu0 %v1855
    %2932 = vmatprep.subr.mxu0 0.0
    %2933 = vmatpush1.msra.mxu0 %v1856
    %2934 = vmatprep.subr.mxu0 0.0
    %2935 = vmatpush1.msra.mxu0 %v1857
    %2936 = vmatprep.subr.mxu0 0.0
    %2937 = vmatpush1.msra.mxu0 %v1858
    %2938 = vmatprep.subr.mxu0 0.0
    %2939 = vmatpush1.msra.mxu0 0.0
    %2940 = vmatprep.subr.mxu0 0.0
    %2941 = vmatpush1.msra.mxu0 0.0
    %2942 = vmatprep.subr.mxu0 0.0
    %2943 = vmatpush1.msra.mxu0 0.0
    %2944 = vmatprep.subr.mxu0 0.0
    %2945 = vmatpush1.msra.mxu0 0.0
    %2946 = vmatprep.subr.mxu0 0.0
    %2947 = vmatpush1.msra.mxu0 0.0
    %2948 = vmatprep.subr.mxu0 0.0
    %2949 = vmatpush1.msra.mxu0 0.0
    %2950 = vmatprep.subr.mxu0 0.0
    %2951 = vmatpush1.msra.mxu0 0.0
    %2952 = vmatprep.subr.mxu0 0.0
    %2953 = vmatpush1.msra.mxu0 0.0
    %2954 = vmatprep.subr.mxu0 0.0
    %2955 = vmatpush1.msra.mxu0 0.0
    %2956 = vmatprep.subr.mxu0 0.0
    %2957 = vmatpush1.msra.mxu0 0.0
    %2958 = vmatprep.subr.mxu0 0.0
    %2959 = vmatpush1.msra.mxu0 0.0
    %2960 = vmatprep.subr.mxu0 0.0
    %2961 = vmatpush1.msra.mxu0 0.0
    %2962 = vmatprep.subr.mxu0 0.0
    %2963 = vmatpush1.msra.mxu0 0.0
    %2964 = vmatprep.subr.mxu0 0.0
    %2965 = vmatpush1.msra.mxu0 0.0
    %2966 = vmatprep.subr.mxu0 0.0
    %2967 = vmatpush1.msra.mxu0 0.0
    %2968 = vmatprep.subr.mxu0 0.0
    %2969 = vmatpush1.msra.mxu0 0.0
    %2970 = vmatprep.subr.mxu0 0.0
    %2971 = vmatpush1.msra.mxu0 0.0
    %2972 = vmatprep.subr.mxu0 0.0
    %2973 = vmatpush1.msra.mxu0 0.0
    %2974 = vmatprep.subr.mxu0 0.0
    %2975 = vmatpush1.msra.mxu0 0.0
    %2976 = vmatprep.subr.mxu0 0.0
    %2977 = vmatpush1.msra.mxu0 0.0
    %2978 = vmatprep.subr.mxu0 0.0
    %2979 = vmatpush1.msra.mxu0 0.0
    %2980 = vmatprep.subr.mxu0 0.0
    %2981 = vmatpush1.msra.mxu0 0.0
    %2982 = vmatprep.subr.mxu0 0.0
    %2983 = vmatpush1.msra.mxu0 0.0
    %2984 = vmatprep.subr.mxu0 0.0
    %2985 = vmatpush1.msra.mxu0 0.0
    %2986 = vmatprep.mubr.f32.mxu0 0.0
    %2987 = vmatmul.mubr.f32.gmra.mrb[0].mxu0 %v2920
    %v2988 = vpop.f32.mrb[0].mxu0
    %v2989 = vadd.f32 %v1859, %v2988
    %v2990 = vpop.f32.mrb[0].mxu0
    %2991 = vdwg.mxu0
    %v2993 = vrot.slane %v2989, 7
    %vm2995 = vcmask 1040384
    %v2996 = vsel %vm2995, %v1930, %v2993
    %2997 = vst [vmem:[#allocation5] sm:$0x3] %v2996
    // Predicated region
    $region46: #{convnet_forward.1} parent=1 // pred_check
      _
    $region47: #{convnet_forward.1} parent=1 // pred_check_branch
      %2999 = sbr.rel (0) target = $region49
    $region48: #{convnet_forward.1} parent=1 // pred_region
      %s3001 = ssub.s32 32, 32
      %3002 = vsyncadd [#allocation4], %s3001
      %s3004 = sshll.u32 [#allocation5], 4
      %s3005 = int_to_ptr.vmem [resolvable:$true] %s3004
      %3007 = dma.vmem_to_hbm [thread:$0]  %s3005, 32, %s10, [#allocation4]
    $region49: #{convnet_forward.1} parent=1 // pred_fallthru
      _
    // Predicated region
    $region50: #{convnet_forward.1} parent=1 // pred_check
      _
    $region51: #{convnet_forward.1} parent=1 // pred_check_branch
      %3009 = sbr.rel (0) target = $region53
    $region52: #{convnet_forward.1} parent=1 // pred_region
      %3010 = dma.done [#allocation4], 32
    $region53: #{convnet_forward.1} parent=1 // pred_fallthru
      _
    %3011 = vsyncpa [#allocation3], 1
    %3012 = vsyncpa [#allocation4], 1

</llo_original>
